<compile_context>
chip_gen: v7x
topology: tpu7x:2x2x1
jax: 0.10.0
libtpu: 0.0.40
codegen_flags: <defaults>
</compile_context>

<pallas_src>
import functools

import jax
import jax.numpy as jnp
from jax import lax
from jax.experimental import pallas as pl
from jax.experimental.pallas import tpu as pltpu


# ----------------------------------------------------------------------------
# Pallas kernel: GCN(x2, fused) -> Linear(W, split) -> Linear -> ReLU -> LayerNorm
# ----------------------------------------------------------------------------
def _encoder_kernel(a_f_ref, a_b_ref, x_ref,
                    dcf_ref, dcb_ref, drf_ref, drb_ref,
                    wg_ref, bgf_ref, bgb_ref,
                    wwf_ref, wwb_ref, bw_ref,
                    wl_ref, bl_ref, gamma_ref, beta_ref,
                    o_ref, *, dff):
    # Fused direction projection: one lane-dense matmul instead of two narrow ones.
    # (Recomputed per row-tile; tiny vs. the N^2 aggregation and keeps tiles independent
    #  so the grid axis can be "parallel".)
    p = jnp.dot(x_ref[...], wg_ref[...], preferred_element_type=jnp.float32)  # (Np, 2*dff)

    # Fold the column normalisation D_c^{-1/2} into the projected features.
    pf = p[:, :dff] * dcf_ref[...]          # (Np, dff)
    pb = p[:, dff:] * dcb_ref[...]          # (Np, dff)

    # Aggregate with the raw (A + I) row tile, then apply the row factor D_r^{-1/2}.
    yf = drf_ref[...] * jnp.dot(a_f_ref[...], pf,
                                preferred_element_type=jnp.float32) + bgf_ref[...]
    yb = drb_ref[...] * jnp.dot(a_b_ref[...], pb,
                                preferred_element_type=jnp.float32) + bgb_ref[...]

    # GraphConv.W without materialising the concat: split-weight matmuls into one sum.
    z = (jnp.dot(yf, wwf_ref[...], preferred_element_type=jnp.float32)
         + jnp.dot(yb, wwb_ref[...], preferred_element_type=jnp.float32)
         + bw_ref[...])

    # Encoder-layer linear + ReLU (dropout = identity at inference).
    h = jnp.dot(z, wl_ref[...], preferred_element_type=jnp.float32) + bl_ref[...]
    h = jnp.maximum(h, 0.0)

    # One-pass LayerNorm over the feature axis (eps=1e-5, biased variance, affine).
    mu = jnp.mean(h, axis=-1, keepdims=True)
    ms = jnp.mean(h * h, axis=-1, keepdims=True)
    var = ms - mu * mu
    o_ref[...] = (h - mu) * lax.rsqrt(var + 1e-5) * gamma_ref[...] + beta_ref[...]


def _full_spec(shape):
    return pl.BlockSpec(shape, lambda i: (0,) * len(shape))


# ----------------------------------------------------------------------------
# JAX glue: raw (A + I) per direction (padded) and the D^{-1/2} vector.
# Normalisation itself happens inside the kernel.
# ----------------------------------------------------------------------------
def _raw_adj_and_dinv(edges, mask, n, n_pad):
    src, dst = edges[0], edges[1]
    w = mask.astype(jnp.float32)
    # A[t, s] accumulates weight for edge s -> t (flow source_to_target).
    adj = jnp.zeros((n_pad, n_pad), jnp.float32).at[dst, src].add(w)
    diag = jnp.arange(n)
    adj = adj.at[diag, diag].add(1.0)                    # add_self_loops=True
    deg = adj.sum(axis=1)                                # includes self loop
    dinv = jnp.where(deg > 0, lax.rsqrt(deg), 0.0)       # padded rows -> 0
    return adj, dinv[:, None]


@functools.partial(jax.jit, static_argnames=("tile_rows",))
def shallow_lattice_encoder_layer(x, edges, params, *, tile_rows=128):
    n, d_model = x.shape
    dff = params["wg_f"].shape[1]
    src, dst = edges[0], edges[1]

    # Pad the node dimension up to a multiple of the row tile.
    n_pad = ((n + tile_rows - 1) // tile_rows) * tile_rows
    tn = tile_rows

    a_f, dinv_f = _raw_adj_and_dinv(edges, src < dst, n, n_pad)   # forward:  src < dst
    a_b, dinv_b = _raw_adj_and_dinv(edges, src > dst, n, n_pad)   # backward: src > dst
    x_p = jnp.zeros((n_pad, d_model), jnp.float32).at[:n].set(x)

    # Host-side (cheap) weight reshaping: fuse direction projections, split GraphConv.W.
    wg = jnp.concatenate([params["wg_f"], params["wg_b"]], axis=1)   # (d_model, 2*dff)
    ww_f = params["ww"][:dff]
    ww_b = params["ww"][dff:]

    grid = (n_pad // tn,)

    in_specs = [
        pl.BlockSpec((tn, n_pad), lambda i: (i, 0)),   # A_f row tile
        pl.BlockSpec((tn, n_pad), lambda i: (i, 0)),   # A_b row tile
        _full_spec((n_pad, d_model)),                  # x (resident)
        _full_spec((n_pad, 1)),                        # dinv_f (column factor, resident)
        _full_spec((n_pad, 1)),                        # dinv_b (column factor, resident)
        pl.BlockSpec((tn, 1), lambda i: (i, 0)),       # dinv_f row tile (row factor)
        pl.BlockSpec((tn, 1), lambda i: (i, 0)),       # dinv_b row tile (row factor)
        _full_spec(wg.shape),
        _full_spec(params["bg_f"].shape),
        _full_spec(params["bg_b"].shape),
        _full_spec(ww_f.shape),
        _full_spec(ww_b.shape),
        _full_spec(params["bw"].shape),
        _full_spec(params["wl"].shape),
        _full_spec(params["bl"].shape),
        _full_spec(params["gamma"].shape),
        _full_spec(params["beta"].shape),
    ]

    out = pl.pallas_call(
        functools.partial(_encoder_kernel, dff=dff),
        out_shape=jax.ShapeDtypeStruct((n_pad, d_model), jnp.float32),
        grid=grid,
        in_specs=in_specs,
        out_specs=pl.BlockSpec((tn, d_model), lambda i: (i, 0)),
        compiler_params=pltpu.CompilerParams(
            dimension_semantics=("parallel",)),
    )(a_f, a_b, x_p, dinv_f, dinv_b, dinv_f, dinv_b,
      wg, params["bg_f"], params["bg_b"],
      ww_f, ww_b, params["bw"],
      params["wl"], params["bl"], params["gamma"], params["beta"])

    return out[:n]


# ----------------------------------------------------------------------------
# Pure-JAX reference (mirrors the PyTorch module exactly) for a sanity check.
# ----------------------------------------------------------------------------
def _reference(x, edges, params):
    n = x.shape[0]
    src, dst = edges[0], edges[1]

    def direction(mask, w, b):
        a = jnp.zeros((n, n), jnp.float32).at[dst, src].add(mask.astype(jnp.float32))
        a = a + jnp.eye(n, dtype=jnp.float32)
        deg = a.sum(axis=1)
        dinv = jnp.where(deg > 0, 1.0 / jnp.sqrt(deg), 0.0)
        a = dinv[:, None] * a * dinv[None, :]
        return a @ (x @ w) + b

    yf = direction(src < dst, params["wg_f"], params["bg_f"])
    yb = direction(src > dst, params["wg_b"], params["bg_b"])
    y = jnp.concatenate([yf, yb], axis=-1)
    z = y @ params["ww"] + params["bw"]
    h = jnp.maximum(z @ params["wl"] + params["bl"], 0.0)
    mu = h.mean(-1, keepdims=True)
    var = ((h - mu) ** 2).mean(-1, keepdims=True)
    return (h - mu) / jnp.sqrt(var + 1e-5) * params["gamma"] + params["beta"]


# ----------------------------------------------------------------------------
# Deterministic parameter init (synthetic; shapes follow the module's __init__)
# ----------------------------------------------------------------------------
def init_params(key, d_model, dim_feedforward):
    ks = jax.random.split(key, 8)
    s = 0.1
    dff = dim_feedforward
    return {
        # GCNConv weights stored [in, out] so the kernel does x @ W directly
        "wg_f": s * jax.random.normal(ks[0], (d_model, dff), jnp.float32),
        "bg_f": s * jax.random.normal(ks[1], (1, dff), jnp.float32),
        "wg_b": s * jax.random.normal(ks[2], (d_model, dff), jnp.float32),
        "bg_b": s * jax.random.normal(ks[3], (1, dff), jnp.float32),
        # GraphConv.W : Linear(2*dff -> dff)
        "ww": s * jax.random.normal(ks[4], (2 * dff, dff), jnp.float32),
        "bw": s * jax.random.normal(ks[5], (1, dff), jnp.float32),
        # encoder-layer linear : Linear(dff -> d_model)
        "wl": s * jax.random.normal(ks[6], (dff, d_model), jnp.float32),
        "bl": s * jax.random.normal(ks[7], (1, d_model), jnp.float32),
        # LayerNorm(d_model) affine params
        "gamma": jnp.ones((1, d_model), jnp.float32),
        "beta": jnp.zeros((1, d_model), jnp.float32),
    }


if __name__ == "__main__":
    key = jax.random.PRNGKey(0)
    k_x, k_e, k_p = jax.random.split(key, 3)

    N = 256           # number of lattice nodes (-> grid of 2 row tiles)
    D_MODEL = 64
    DIM_FF = 128      # 2*dff = 256: fused projection halves split on a vreg boundary
    E = 512           # number of directed edges

    x = jax.random.normal(k_x, (N, D_MODEL), jnp.float32)
    edges = jax.random.randint(k_e, (2, E), 0, N, dtype=jnp.int32)
    params = init_params(k_p, D_MODEL, DIM_FF)

    out = shallow_lattice_encoder_layer(x, edges, params)
    jax.block_until_ready(out)
    assert out.shape == (N, D_MODEL)

    ref = _reference(x, edges, params)
    err = float(jnp.max(jnp.abs(out - ref)))
    assert err < 2e-3, f"mismatch vs reference: max|diff|={err}"

    print("KERNEL_OK")
</pallas_src>

<mosaic_0001>
module attributes {stable_mosaic.version = 11 : i64} {
  func.func private @main(%arg0: i32) attributes {dimension_semantics = [#tpu.dimension_semantics<core_parallel>], iteration_bounds = array<i64: 2>, tpu.core_type = #tpu.core_type<sc_scalar_subcore>, window_params = []} {
    return
  }
}

module attributes {stable_mosaic.version = 11 : i64} {
  func.func private @main(%arg0: i32) attributes {dimension_semantics = [#tpu.dimension_semantics<core_parallel>], iteration_bounds = array<i64: 2>, tpu.core_type = #tpu.core_type<sc_scalar_subcore>, window_params = []} {
    return
  }
}

module attributes {stable_mosaic.version = 11 : i64} {
  func.func @_encoder_kernel(%arg0: i32, %arg1: memref<128x256xf32, #tpu.memory_space<vmem>>, %arg2: memref<128x256xf32, #tpu.memory_space<vmem>>, %arg3: memref<256x64xf32, #tpu.memory_space<vmem>>, %arg4: memref<256x1xf32, #tpu.memory_space<vmem>>, %arg5: memref<256x1xf32, #tpu.memory_space<vmem>>, %arg6: memref<128x1xf32, #tpu.memory_space<vmem>>, %arg7: memref<128x1xf32, #tpu.memory_space<vmem>>, %arg8: memref<64x256xf32, #tpu.memory_space<vmem>>, %arg9: memref<1x128xf32, #tpu.memory_space<vmem>>, %arg10: memref<1x128xf32, #tpu.memory_space<vmem>>, %arg11: memref<128x128xf32, #tpu.memory_space<vmem>>, %arg12: memref<128x128xf32, #tpu.memory_space<vmem>>, %arg13: memref<1x128xf32, #tpu.memory_space<vmem>>, %arg14: memref<128x64xf32, #tpu.memory_space<vmem>>, %arg15: memref<1x64xf32, #tpu.memory_space<vmem>>, %arg16: memref<1x64xf32, #tpu.memory_space<vmem>>, %arg17: memref<1x64xf32, #tpu.memory_space<vmem>>, %arg18: memref<128x64xf32, #tpu.memory_space<vmem>>) attributes {dimension_semantics = [#tpu.dimension_semantics<parallel>], iteration_bounds = array<i64: 2>, scalar_prefetch = 0 : i64, scratch_operands = 0 : i64, tpu.core_type = #tpu.core_type<tc>, window_params = [{transform_indices = @transform_0, window_bounds = array<i64: 128, 256>}, {transform_indices = @transform_1, window_bounds = array<i64: 128, 256>}, {pipeline_mode = #tpu.pipeline_mode<synchronous>, transform_indices = @transform_2, window_bounds = array<i64: 256, 64>}, {pipeline_mode = #tpu.pipeline_mode<synchronous>, transform_indices = @transform_3, window_bounds = array<i64: 256, 1>}, {pipeline_mode = #tpu.pipeline_mode<synchronous>, transform_indices = @transform_4, window_bounds = array<i64: 256, 1>}, {transform_indices = @transform_5, window_bounds = array<i64: 128, 1>}, {transform_indices = @transform_6, window_bounds = array<i64: 128, 1>}, {pipeline_mode = #tpu.pipeline_mode<synchronous>, transform_indices = @transform_7, window_bounds = array<i64: 64, 256>}, {pipeline_mode = #tpu.pipeline_mode<synchronous>, transform_indices = @transform_8, window_bounds = array<i64: 1, 128>}, {pipeline_mode = #tpu.pipeline_mode<synchronous>, transform_indices = @transform_9, window_bounds = array<i64: 1, 128>}, {pipeline_mode = #tpu.pipeline_mode<synchronous>, transform_indices = @transform_10, window_bounds = array<i64: 128, 128>}, {pipeline_mode = #tpu.pipeline_mode<synchronous>, transform_indices = @transform_11, window_bounds = array<i64: 128, 128>}, {pipeline_mode = #tpu.pipeline_mode<synchronous>, transform_indices = @transform_12, window_bounds = array<i64: 1, 128>}, {pipeline_mode = #tpu.pipeline_mode<synchronous>, transform_indices = @transform_13, window_bounds = array<i64: 128, 64>}, {pipeline_mode = #tpu.pipeline_mode<synchronous>, transform_indices = @transform_14, window_bounds = array<i64: 1, 64>}, {pipeline_mode = #tpu.pipeline_mode<synchronous>, transform_indices = @transform_15, window_bounds = array<i64: 1, 64>}, {pipeline_mode = #tpu.pipeline_mode<synchronous>, transform_indices = @transform_16, window_bounds = array<i64: 1, 64>}, {transform_indices = @transform_17, window_bounds = array<i64: 128, 64>}]} {
    %c0 = arith.constant 0 : index
    %c0_0 = arith.constant 0 : index
    %0 = vector.load %arg3[%c0, %c0_0] : memref<256x64xf32, #tpu.memory_space<vmem>>, vector<256x64xf32>
    %c0_1 = arith.constant 0 : index
    %c0_2 = arith.constant 0 : index
    %1 = vector.load %arg8[%c0_1, %c0_2] : memref<64x256xf32, #tpu.memory_space<vmem>>, vector<64x256xf32>
    %cst = arith.constant dense<0.000000e+00> : vector<256x256xf32>
    %2 = tpu.matmul %0, %1, %cst {dimension_numbers = #tpu.dot_dimension_numbers<[1], [0], [0], [1], [0, 0, 1, 1], [], []>} : vector<256x64xf32>, vector<64x256xf32>, vector<256x256xf32> -> vector<256x256xf32>
    %3 = vector.extract_strided_slice %2 {offsets = [0, 0], sizes = [256, 128], strides = [1, 1]} : vector<256x256xf32> to vector<256x128xf32>
    %c0_3 = arith.constant 0 : index
    %c0_4 = arith.constant 0 : index
    %4 = vector.load %arg4[%c0_3, %c0_4] : memref<256x1xf32, #tpu.memory_space<vmem>>, vector<256x1xf32>
    %5 = vector.broadcast %4 : vector<256x1xf32> to vector<256x128xf32>
    %6 = arith.mulf %3, %5 : vector<256x128xf32>
    %7 = vector.extract_strided_slice %2 {offsets = [0, 128], sizes = [256, 128], strides = [1, 1]} : vector<256x256xf32> to vector<256x128xf32>
    %c0_5 = arith.constant 0 : index
    %c0_6 = arith.constant 0 : index
    %8 = vector.load %arg5[%c0_5, %c0_6] : memref<256x1xf32, #tpu.memory_space<vmem>>, vector<256x1xf32>
    %9 = vector.broadcast %8 : vector<256x1xf32> to vector<256x128xf32>
    %10 = arith.mulf %7, %9 : vector<256x128xf32>
    %c0_7 = arith.constant 0 : index
    %c0_8 = arith.constant 0 : index
    %11 = vector.load %arg6[%c0_7, %c0_8] : memref<128x1xf32, #tpu.memory_space<vmem>>, vector<128x1xf32>
    %c0_9 = arith.constant 0 : index
    %c0_10 = arith.constant 0 : index
    %12 = vector.load %arg1[%c0_9, %c0_10] : memref<128x256xf32, #tpu.memory_space<vmem>>, vector<128x256xf32>
    %cst_11 = arith.constant dense<0.000000e+00> : vector<128x128xf32>
    %13 = tpu.matmul %12, %6, %cst_11 {dimension_numbers = #tpu.dot_dimension_numbers<[1], [0], [0], [1], [0, 0, 1, 1], [], []>} : vector<128x256xf32>, vector<256x128xf32>, vector<128x128xf32> -> vector<128x128xf32>
    %14 = vector.broadcast %11 : vector<128x1xf32> to vector<128x128xf32>
    %15 = arith.mulf %14, %13 : vector<128x128xf32>
    %c0_12 = arith.constant 0 : index
    %c0_13 = arith.constant 0 : index
    %16 = vector.load %arg9[%c0_12, %c0_13] : memref<1x128xf32, #tpu.memory_space<vmem>>, vector<1x128xf32>
    %17 = vector.broadcast %16 : vector<1x128xf32> to vector<128x128xf32>
    %18 = arith.addf %15, %17 : vector<128x128xf32>
    %c0_14 = arith.constant 0 : index
    %c0_15 = arith.constant 0 : index
    %19 = vector.load %arg7[%c0_14, %c0_15] : memref<128x1xf32, #tpu.memory_space<vmem>>, vector<128x1xf32>
    %c0_16 = arith.constant 0 : index
    %c0_17 = arith.constant 0 : index
    %20 = vector.load %arg2[%c0_16, %c0_17] : memref<128x256xf32, #tpu.memory_space<vmem>>, vector<128x256xf32>
    %cst_18 = arith.constant dense<0.000000e+00> : vector<128x128xf32>
    %21 = tpu.matmul %20, %10, %cst_18 {dimension_numbers = #tpu.dot_dimension_numbers<[1], [0], [0], [1], [0, 0, 1, 1], [], []>} : vector<128x256xf32>, vector<256x128xf32>, vector<128x128xf32> -> vector<128x128xf32>
    %22 = vector.broadcast %19 : vector<128x1xf32> to vector<128x128xf32>
    %23 = arith.mulf %22, %21 : vector<128x128xf32>
    %c0_19 = arith.constant 0 : index
    %c0_20 = arith.constant 0 : index
    %24 = vector.load %arg10[%c0_19, %c0_20] : memref<1x128xf32, #tpu.memory_space<vmem>>, vector<1x128xf32>
    %25 = vector.broadcast %24 : vector<1x128xf32> to vector<128x128xf32>
    %26 = arith.addf %23, %25 : vector<128x128xf32>
    %c0_21 = arith.constant 0 : index
    %c0_22 = arith.constant 0 : index
    %27 = vector.load %arg11[%c0_21, %c0_22] : memref<128x128xf32, #tpu.memory_space<vmem>>, vector<128x128xf32>
    %cst_23 = arith.constant dense<0.000000e+00> : vector<128x128xf32>
    %28 = tpu.matmul %18, %27, %cst_23 {dimension_numbers = #tpu.dot_dimension_numbers<[1], [0], [0], [1], [0, 0, 1, 1], [], []>} : vector<128x128xf32>, vector<128x128xf32>, vector<128x128xf32> -> vector<128x128xf32>
    %c0_24 = arith.constant 0 : index
    %c0_25 = arith.constant 0 : index
    %29 = vector.load %arg12[%c0_24, %c0_25] : memref<128x128xf32, #tpu.memory_space<vmem>>, vector<128x128xf32>
    %cst_26 = arith.constant dense<0.000000e+00> : vector<128x128xf32>
    %30 = tpu.matmul %26, %29, %cst_26 {dimension_numbers = #tpu.dot_dimension_numbers<[1], [0], [0], [1], [0, 0, 1, 1], [], []>} : vector<128x128xf32>, vector<128x128xf32>, vector<128x128xf32> -> vector<128x128xf32>
    %31 = arith.addf %28, %30 : vector<128x128xf32>
    %c0_27 = arith.constant 0 : index
    %c0_28 = arith.constant 0 : index
    %32 = vector.load %arg13[%c0_27, %c0_28] : memref<1x128xf32, #tpu.memory_space<vmem>>, vector<1x128xf32>
    %33 = vector.broadcast %32 : vector<1x128xf32> to vector<128x128xf32>
    %34 = arith.addf %31, %33 : vector<128x128xf32>
    %c0_29 = arith.constant 0 : index
    %c0_30 = arith.constant 0 : index
    %35 = vector.load %arg14[%c0_29, %c0_30] : memref<128x64xf32, #tpu.memory_space<vmem>>, vector<128x64xf32>
    %cst_31 = arith.constant dense<0.000000e+00> : vector<128x64xf32>
    %36 = tpu.matmul %34, %35, %cst_31 {dimension_numbers = #tpu.dot_dimension_numbers<[1], [0], [0], [1], [0, 0, 1, 1], [], []>} : vector<128x128xf32>, vector<128x64xf32>, vector<128x64xf32> -> vector<128x64xf32>
    %c0_32 = arith.constant 0 : index
    %c0_33 = arith.constant 0 : index
    %37 = vector.load %arg15[%c0_32, %c0_33] : memref<1x64xf32, #tpu.memory_space<vmem>>, vector<1x64xf32>
    %38 = vector.broadcast %37 : vector<1x64xf32> to vector<128x64xf32>
    %39 = arith.addf %36, %38 : vector<128x64xf32>
    %cst_34 = arith.constant 0.000000e+00 : f32
    %40 = vector.broadcast %cst_34 : f32 to vector<128x64xf32>
    %41 = arith.maximumf %39, %40 : vector<128x64xf32>
    %cst_35 = arith.constant dense<0.000000e+00> : vector<128xf32>
    %42 = vector.multi_reduction <add>, %41, %cst_35 [1] : vector<128x64xf32> to vector<128xf32>
    %43 = vector.shape_cast %42 : vector<128xf32> to vector<128x1xf32>
    %cst_36 = arith.constant 6.400000e+01 : f32
    %44 = vector.broadcast %cst_36 : f32 to vector<128x1xf32>
    %45 = arith.divf %43, %44 : vector<128x1xf32>
    %46 = arith.mulf %41, %41 : vector<128x64xf32>
    %cst_37 = arith.constant dense<0.000000e+00> : vector<128xf32>
    %47 = vector.multi_reduction <add>, %46, %cst_37 [1] : vector<128x64xf32> to vector<128xf32>
    %48 = vector.shape_cast %47 : vector<128xf32> to vector<128x1xf32>
    %cst_38 = arith.constant 6.400000e+01 : f32
    %49 = vector.broadcast %cst_38 : f32 to vector<128x1xf32>
    %50 = arith.divf %48, %49 : vector<128x1xf32>
    %51 = arith.mulf %45, %45 : vector<128x1xf32>
    %52 = arith.subf %50, %51 : vector<128x1xf32>
    %53 = vector.broadcast %45 : vector<128x1xf32> to vector<128x64xf32>
    %54 = arith.subf %41, %53 : vector<128x64xf32>
    %cst_39 = arith.constant 9.99999974E-6 : f32
    %55 = vector.broadcast %cst_39 : f32 to vector<128x1xf32>
    %56 = arith.addf %52, %55 : vector<128x1xf32>
    %57 = math.rsqrt %56 : vector<128x1xf32>
    %58 = vector.broadcast %57 : vector<128x1xf32> to vector<128x64xf32>
    %59 = arith.mulf %54, %58 : vector<128x64xf32>
    %c0_40 = arith.constant 0 : index
    %c0_41 = arith.constant 0 : index
    %60 = vector.load %arg16[%c0_40, %c0_41] : memref<1x64xf32, #tpu.memory_space<vmem>>, vector<1x64xf32>
    %61 = vector.broadcast %60 : vector<1x64xf32> to vector<128x64xf32>
    %62 = arith.mulf %59, %61 : vector<128x64xf32>
    %c0_42 = arith.constant 0 : index
    %c0_43 = arith.constant 0 : index
    %63 = vector.load %arg17[%c0_42, %c0_43] : memref<1x64xf32, #tpu.memory_space<vmem>>, vector<1x64xf32>
    %64 = vector.broadcast %63 : vector<1x64xf32> to vector<128x64xf32>
    %65 = arith.addf %62, %64 : vector<128x64xf32>
    %c0_44 = arith.constant 0 : index
    %c0_45 = arith.constant 0 : index
    %66 = vector.load %arg18[%c0_44, %c0_45] : memref<128x64xf32, #tpu.memory_space<vmem>>, vector<128x64xf32>
    tpu.vector_store %arg18[%c0_44, %c0_45], %65 {strides = array<i32>} : memref<128x64xf32, #tpu.memory_space<vmem>>, vector<128x64xf32>,
    return
  }
  func.func @transform_0(%arg0: i32) -> (i32, i32) {
    %c0_i32 = arith.constant 0 : i32
    %c0_i32_0 = arith.constant 0 : i32
    return %arg0, %c0_i32 : i32, i32
  }
  func.func @transform_1(%arg0: i32) -> (i32, i32) {
    %c0_i32 = arith.constant 0 : i32
    %c0_i32_0 = arith.constant 0 : i32
    return %arg0, %c0_i32 : i32, i32
  }
  func.func @transform_2(%arg0: i32) -> (i32, i32) {
    %c0_i32 = arith.constant 0 : i32
    %c0_i32_0 = arith.constant 0 : i32
    %c0_i32_1 = arith.constant 0 : i32
    return %c0_i32, %c0_i32_0 : i32, i32
  }
  func.func @transform_3(%arg0: i32) -> (i32, i32) {
    %c0_i32 = arith.constant 0 : i32
    %c0_i32_0 = arith.constant 0 : i32
    %c0_i32_1 = arith.constant 0 : i32
    return %c0_i32, %c0_i32_0 : i32, i32
  }
  func.func @transform_4(%arg0: i32) -> (i32, i32) {
    %c0_i32 = arith.constant 0 : i32
    %c0_i32_0 = arith.constant 0 : i32
    %c0_i32_1 = arith.constant 0 : i32
    return %c0_i32, %c0_i32_0 : i32, i32
  }
  func.func @transform_5(%arg0: i32) -> (i32, i32) {
    %c0_i32 = arith.constant 0 : i32
    %c0_i32_0 = arith.constant 0 : i32
    return %arg0, %c0_i32 : i32, i32
  }
  func.func @transform_6(%arg0: i32) -> (i32, i32) {
    %c0_i32 = arith.constant 0 : i32
    %c0_i32_0 = arith.constant 0 : i32
    return %arg0, %c0_i32 : i32, i32
  }
  func.func @transform_7(%arg0: i32) -> (i32, i32) {
    %c0_i32 = arith.constant 0 : i32
    %c0_i32_0 = arith.constant 0 : i32
    %c0_i32_1 = arith.constant 0 : i32
    return %c0_i32, %c0_i32_0 : i32, i32
  }
  func.func @transform_8(%arg0: i32) -> (i32, i32) {
    %c0_i32 = arith.constant 0 : i32
    %c0_i32_0 = arith.constant 0 : i32
    %c0_i32_1 = arith.constant 0 : i32
    return %c0_i32, %c0_i32_0 : i32, i32
  }
  func.func @transform_9(%arg0: i32) -> (i32, i32) {
    %c0_i32 = arith.constant 0 : i32
    %c0_i32_0 = arith.constant 0 : i32
    %c0_i32_1 = arith.constant 0 : i32
    return %c0_i32, %c0_i32_0 : i32, i32
  }
  func.func @transform_10(%arg0: i32) -> (i32, i32) {
    %c0_i32 = arith.constant 0 : i32
    %c0_i32_0 = arith.constant 0 : i32
    %c0_i32_1 = arith.constant 0 : i32
    return %c0_i32, %c0_i32_0 : i32, i32
  }
  func.func @transform_11(%arg0: i32) -> (i32, i32) {
    %c0_i32 = arith.constant 0 : i32
    %c0_i32_0 = arith.constant 0 : i32
    %c0_i32_1 = arith.constant 0 : i32
    return %c0_i32, %c0_i32_0 : i32, i32
  }
  func.func @transform_12(%arg0: i32) -> (i32, i32) {
    %c0_i32 = arith.constant 0 : i32
    %c0_i32_0 = arith.constant 0 : i32
    %c0_i32_1 = arith.constant 0 : i32
    return %c0_i32, %c0_i32_0 : i32, i32
  }
  func.func @transform_13(%arg0: i32) -> (i32, i32) {
    %c0_i32 = arith.constant 0 : i32
    %c0_i32_0 = arith.constant 0 : i32
    %c0_i32_1 = arith.constant 0 : i32
    return %c0_i32, %c0_i32_0 : i32, i32
  }
  func.func @transform_14(%arg0: i32) -> (i32, i32) {
    %c0_i32 = arith.constant 0 : i32
    %c0_i32_0 = arith.constant 0 : i32
    %c0_i32_1 = arith.constant 0 : i32
    return %c0_i32, %c0_i32_0 : i32, i32
  }
  func.func @transform_15(%arg0: i32) -> (i32, i32) {
    %c0_i32 = arith.constant 0 : i32
    %c0_i32_0 = arith.constant 0 : i32
    %c0_i32_1 = arith.constant 0 : i32
    return %c0_i32, %c0_i32_0 : i32, i32
  }
  func.func @transform_16(%arg0: i32) -> (i32, i32) {
    %c0_i32 = arith.constant 0 : i32
    %c0_i32_0 = arith.constant 0 : i32
    %c0_i32_1 = arith.constant 0 : i32
    return %c0_i32, %c0_i32_0 : i32, i32
  }
  func.func @transform_17(%arg0: i32) -> (i32, i32) {
    %c0_i32 = arith.constant 0 : i32
    %c0_i32_0 = arith.constant 0 : i32
    return %arg0, %c0_i32 : i32, i32
  }
}

</mosaic_0001>

<llo_original>
// kernel: shallow_lattice_encoder_layer.1
$region0: #{shallow_lattice_encoder_layer.1}
  #allocation0 [shape = 'u32[]', space=smem, size = 0x4, offset = 0x4, fixed_abs, tag = 'smem constant byte address 0x4 - core index']
  #allocation1 [shape = 'u32[144,128]{1,0:T(1,128)}', space=vmem, size = 0x12000, scoped, tag = 'internal scratch']
  %s0 = inlined_call_operand.vmem [shape: f32[256,256], index: 0, kind: input, shape index: {}]
  %s1 = inlined_call_operand.vmem [shape: f32[256,256], index: 1, kind: input, shape index: {}]
  %s2 = inlined_call_operand.vmem [shape: f32[256,64], index: 2, kind: input, shape index: {}]
  %s3 = inlined_call_operand.vmem [shape: f32[256,1], index: 3, kind: input, shape index: {}, may-alias: {3,5}]
  %s4 = inlined_call_operand.vmem [shape: f32[256,1], index: 4, kind: input, shape index: {}, may-alias: {4,6}]
  %s5 = inlined_call_operand.vmem [shape: f32[256,1], index: 5, kind: input, shape index: {}, may-alias: {3,5}]
  %s6 = inlined_call_operand.vmem [shape: f32[256,1], index: 6, kind: input, shape index: {}, may-alias: {4,6}]
  %s7 = inlined_call_operand.vmem [shape: f32[64,256], index: 7, kind: input, shape index: {}]
  %s8 = inlined_call_operand.vmem [shape: f32[1,128], index: 8, kind: input, shape index: {}]
  %s9 = inlined_call_operand.vmem [shape: f32[1,128], index: 9, kind: input, shape index: {}]
  %s10 = inlined_call_operand.vmem [shape: f32[128,128], index: 10, kind: input, shape index: {}]
  %s11 = inlined_call_operand.vmem [shape: f32[128,128], index: 11, kind: input, shape index: {}]
  %s12 = inlined_call_operand.vmem [shape: f32[1,128], index: 12, kind: input, shape index: {}]
  %s13 = inlined_call_operand.vmem [shape: f32[128,64], index: 13, kind: input, shape index: {}]
  %s14 = inlined_call_operand.vmem [shape: f32[1,64], index: 14, kind: input, shape index: {}]
  %s15 = inlined_call_operand.vmem [shape: f32[1,64], index: 15, kind: input, shape index: {}]
  %s16 = inlined_call_operand.vmem [shape: f32[1,64], index: 16, kind: input, shape index: {}]
  %s17 = inlined_call_operand.vmem [shape: f32[256,64], index: 17, kind: output, shape index: {}]
  %s18 = sld [smem:[#allocation0]]
  $region101: #{shallow_lattice_encoder_layer.1} parent=0
    _
  %s20 = ssub.s32 1, %s18
  %s21 = scalar_select 0, %s20, %s18
  loop: start=0, step=1, limit=4
  $region2: #{shallow_lattice_encoder_layer.1} parent=0 // loop_pre_header
    _
  $region3: #{shallow_lattice_encoder_layer.1} parent=0 // loop_header
    %s23 = sphi 0, %s27
    %p24 = scmp.ge.s32.totalorder %s23, 4
    %s33 = sphi 0, %s35
    %s36 = sphi 0, %s33
    %s37 = sphi 0, %s36
    %s53 = sphi 0, %s37
    %s59 = sphi 0, %s61
    %s62 = sphi 0, %s59
    %s63 = sphi 0, %s62
    %s79 = sphi 0, %s63
    %s83 = sphi 0, %s83
    %s85 = sphi 0, %s83
    %s86 = sphi 0, %s85
    %s100 = sphi 0, %s86
    %s104 = sphi 0, %s104
    %s106 = sphi 0, %s104
    %s107 = sphi 0, %s106
    %s121 = sphi 0, %s107
    %s125 = sphi 0, %s125
    %s127 = sphi 0, %s125
    %s128 = sphi 0, %s127
    %s142 = sphi 0, %s128
    %s148 = sphi 0, %s150
    %s151 = sphi 0, %s148
    %s152 = sphi 0, %s151
    %s168 = sphi 0, %s152
    %s174 = sphi 0, %s176
    %s177 = sphi 0, %s174
    %s178 = sphi 0, %s177
    %s194 = sphi 0, %s178
    %s198 = sphi 0, %s198
    %s200 = sphi 0, %s198
    %s201 = sphi 0, %s200
    %s215 = sphi 0, %s201
    %s219 = sphi 0, %s219
    %s221 = sphi 0, %s219
    %s222 = sphi 0, %s221
    %s236 = sphi 0, %s222
    %s240 = sphi 0, %s240
    %s242 = sphi 0, %s240
    %s243 = sphi 0, %s242
    %s257 = sphi 0, %s243
    %s261 = sphi 0, %s261
    %s263 = sphi 0, %s261
    %s264 = sphi 0, %s263
    %s278 = sphi 0, %s264
    %s282 = sphi 0, %s282
    %s284 = sphi 0, %s282
    %s285 = sphi 0, %s284
    %s299 = sphi 0, %s285
    %s303 = sphi 0, %s303
    %s305 = sphi 0, %s303
    %s306 = sphi 0, %s305
    %s320 = sphi 0, %s306
    %s324 = sphi 0, %s324
    %s326 = sphi 0, %s324
    %s327 = sphi 0, %s326
    %s341 = sphi 0, %s327
    %s345 = sphi 0, %s345
    %s347 = sphi 0, %s345
    %s348 = sphi 0, %s347
    %s362 = sphi 0, %s348
    %s366 = sphi 0, %s366
    %s368 = sphi 0, %s366
    %s369 = sphi 0, %s368
    %s383 = sphi 0, %s369
    %s387 = sphi 0, %s387
    %s389 = sphi 0, %s387
    %s390 = sphi 0, %s389
    %s404 = sphi 0, %s390
    %s410 = sphi 0, %s412
    %s413 = sphi 0, %s410
    %s414 = sphi 0, %s413
    %s430 = sphi 0, %s414
  $region4: #{shallow_lattice_encoder_layer.1} parent=0 // loop_header_branch
    %26 = sbr.rel (%p24) target = $region8
  $region5: #{shallow_lattice_encoder_layer.1} parent=0 // loop_body
    %s28 = ssub.s32 %s23, 1
    %s29 = ssub.s32 %s23, 2
    %s30 = sadd.s32 %s23, 1
    %s31 = ssub.s32 %s23, %s30
    %p32 = scmp.eq.s32.totalorder %s31, 0
    %s34 = sadd.s32 %s33, 1
    %s35 = scalar_select %p32, %s33, %s34
    %p38 = pneg %p32
    %p39 = scmp.eq.s32.totalorder %s23, 1
    %p40 = por %p38, %p39
    %p41 = scmp.ne.s32.totalorder %s33, %s36
    %p42 = scmp.eq.s32.totalorder %s23, 0
    %p43 = por %p41, %p42
    %p44 = scmp.ne.s32.totalorder %s33, %s36
    %p45 = scmp.eq.s32.totalorder %s28, 1
    %p46 = por %p44, %p45
    %p47 = scmp.ne.s32.totalorder %s36, %s37
    %p48 = scmp.eq.s32.totalorder %s28, 0
    %p49 = por %p47, %p48
    %p50 = scmp.ne.s32.totalorder %s36, %s37
    %p51 = scmp.eq.s32.totalorder %s29, 1
    %p52 = por %p50, %p51
    %p54 = scmp.ne.s32.totalorder %s37, %s53
    %p55 = scmp.eq.s32.totalorder %s29, 0
    %p56 = por %p54, %p55
    %s57 = ssub.s32 %s23, %s30
    %p58 = scmp.eq.s32.totalorder %s57, 0
    %s60 = sadd.s32 %s59, 1
    %s61 = scalar_select %p58, %s59, %s60
    %p64 = pneg %p58
    %p65 = scmp.eq.s32.totalorder %s23, 1
    %p66 = por %p64, %p65
    %p67 = scmp.ne.s32.totalorder %s59, %s62
    %p68 = scmp.eq.s32.totalorder %s23, 0
    %p69 = por %p67, %p68
    %p70 = scmp.ne.s32.totalorder %s59, %s62
    %p71 = scmp.eq.s32.totalorder %s28, 1
    %p72 = por %p70, %p71
    %p73 = scmp.ne.s32.totalorder %s62, %s63
    %p74 = scmp.eq.s32.totalorder %s28, 0
    %p75 = por %p73, %p74
    %p76 = scmp.ne.s32.totalorder %s62, %s63
    %p77 = scmp.eq.s32.totalorder %s29, 1
    %p78 = por %p76, %p77
    %p80 = scmp.ne.s32.totalorder %s63, %s79
    %p81 = scmp.eq.s32.totalorder %s29, 0
    %p82 = por %p80, %p81
    %s84 = sadd.s32 %s83, 1
    %p87 = scmp.eq.s32.totalorder %s23, 1
    %p88 = scmp.ne.s32.totalorder %s83, %s85
    %p89 = scmp.eq.s32.totalorder %s23, 0
    %p90 = por %p88, %p89
    %p91 = scmp.ne.s32.totalorder %s83, %s85
    %p92 = scmp.eq.s32.totalorder %s28, 1
    %p93 = por %p91, %p92
    %p94 = scmp.ne.s32.totalorder %s85, %s86
    %p95 = scmp.eq.s32.totalorder %s28, 0
    %p96 = por %p94, %p95
    %p97 = scmp.ne.s32.totalorder %s85, %s86
    %p98 = scmp.eq.s32.totalorder %s29, 1
    %p99 = por %p97, %p98
    %p101 = scmp.ne.s32.totalorder %s86, %s100
    %p102 = scmp.eq.s32.totalorder %s29, 0
    %p103 = por %p101, %p102
    %s105 = sadd.s32 %s104, 1
    %p108 = scmp.eq.s32.totalorder %s23, 1
    %p109 = scmp.ne.s32.totalorder %s104, %s106
    %p110 = scmp.eq.s32.totalorder %s23, 0
    %p111 = por %p109, %p110
    %p112 = scmp.ne.s32.totalorder %s104, %s106
    %p113 = scmp.eq.s32.totalorder %s28, 1
    %p114 = por %p112, %p113
    %p115 = scmp.ne.s32.totalorder %s106, %s107
    %p116 = scmp.eq.s32.totalorder %s28, 0
    %p117 = por %p115, %p116
    %p118 = scmp.ne.s32.totalorder %s106, %s107
    %p119 = scmp.eq.s32.totalorder %s29, 1
    %p120 = por %p118, %p119
    %p122 = scmp.ne.s32.totalorder %s107, %s121
    %p123 = scmp.eq.s32.totalorder %s29, 0
    %p124 = por %p122, %p123
    %s126 = sadd.s32 %s125, 1
    %p129 = scmp.eq.s32.totalorder %s23, 1
    %p130 = scmp.ne.s32.totalorder %s125, %s127
    %p131 = scmp.eq.s32.totalorder %s23, 0
    %p132 = por %p130, %p131
    %p133 = scmp.ne.s32.totalorder %s125, %s127
    %p134 = scmp.eq.s32.totalorder %s28, 1
    %p135 = por %p133, %p134
    %p136 = scmp.ne.s32.totalorder %s127, %s128
    %p137 = scmp.eq.s32.totalorder %s28, 0
    %p138 = por %p136, %p137
    %p139 = scmp.ne.s32.totalorder %s127, %s128
    %p140 = scmp.eq.s32.totalorder %s29, 1
    %p141 = por %p139, %p140
    %p143 = scmp.ne.s32.totalorder %s128, %s142
    %p144 = scmp.eq.s32.totalorder %s29, 0
    %p145 = por %p143, %p144
    %s146 = ssub.s32 %s23, %s30
    %p147 = scmp.eq.s32.totalorder %s146, 0
    %s149 = sadd.s32 %s148, 1
    %s150 = scalar_select %p147, %s148, %s149
    %p153 = pneg %p147
    %p154 = scmp.eq.s32.totalorder %s23, 1
    %p155 = por %p153, %p154
    %p156 = scmp.ne.s32.totalorder %s148, %s151
    %p157 = scmp.eq.s32.totalorder %s23, 0
    %p158 = por %p156, %p157
    %p159 = scmp.ne.s32.totalorder %s148, %s151
    %p160 = scmp.eq.s32.totalorder %s28, 1
    %p161 = por %p159, %p160
    %p162 = scmp.ne.s32.totalorder %s151, %s152
    %p163 = scmp.eq.s32.totalorder %s28, 0
    %p164 = por %p162, %p163
    %p165 = scmp.ne.s32.totalorder %s151, %s152
    %p166 = scmp.eq.s32.totalorder %s29, 1
    %p167 = por %p165, %p166
    %p169 = scmp.ne.s32.totalorder %s152, %s168
    %p170 = scmp.eq.s32.totalorder %s29, 0
    %p171 = por %p169, %p170
    %s172 = ssub.s32 %s23, %s30
    %p173 = scmp.eq.s32.totalorder %s172, 0
    %s175 = sadd.s32 %s174, 1
    %s176 = scalar_select %p173, %s174, %s175
    %p179 = pneg %p173
    %p180 = scmp.eq.s32.totalorder %s23, 1
    %p181 = por %p179, %p180
    %p182 = scmp.ne.s32.totalorder %s174, %s177
    %p183 = scmp.eq.s32.totalorder %s23, 0
    %p184 = por %p182, %p183
    %p185 = scmp.ne.s32.totalorder %s174, %s177
    %p186 = scmp.eq.s32.totalorder %s28, 1
    %p187 = por %p185, %p186
    %p188 = scmp.ne.s32.totalorder %s177, %s178
    %p189 = scmp.eq.s32.totalorder %s28, 0
    %p190 = por %p188, %p189
    %p191 = scmp.ne.s32.totalorder %s177, %s178
    %p192 = scmp.eq.s32.totalorder %s29, 1
    %p193 = por %p191, %p192
    %p195 = scmp.ne.s32.totalorder %s178, %s194
    %p196 = scmp.eq.s32.totalorder %s29, 0
    %p197 = por %p195, %p196
    %s199 = sadd.s32 %s198, 1
    %p202 = scmp.eq.s32.totalorder %s23, 1
    %p203 = scmp.ne.s32.totalorder %s198, %s200
    %p204 = scmp.eq.s32.totalorder %s23, 0
    %p205 = por %p203, %p204
    %p206 = scmp.ne.s32.totalorder %s198, %s200
    %p207 = scmp.eq.s32.totalorder %s28, 1
    %p208 = por %p206, %p207
    %p209 = scmp.ne.s32.totalorder %s200, %s201
    %p210 = scmp.eq.s32.totalorder %s28, 0
    %p211 = por %p209, %p210
    %p212 = scmp.ne.s32.totalorder %s200, %s201
    %p213 = scmp.eq.s32.totalorder %s29, 1
    %p214 = por %p212, %p213
    %p216 = scmp.ne.s32.totalorder %s201, %s215
    %p217 = scmp.eq.s32.totalorder %s29, 0
    %p218 = por %p216, %p217
    %s220 = sadd.s32 %s219, 1
    %p223 = scmp.eq.s32.totalorder %s23, 1
    %p224 = scmp.ne.s32.totalorder %s219, %s221
    %p225 = scmp.eq.s32.totalorder %s23, 0
    %p226 = por %p224, %p225
    %p227 = scmp.ne.s32.totalorder %s219, %s221
    %p228 = scmp.eq.s32.totalorder %s28, 1
    %p229 = por %p227, %p228
    %p230 = scmp.ne.s32.totalorder %s221, %s222
    %p231 = scmp.eq.s32.totalorder %s28, 0
    %p232 = por %p230, %p231
    %p233 = scmp.ne.s32.totalorder %s221, %s222
    %p234 = scmp.eq.s32.totalorder %s29, 1
    %p235 = por %p233, %p234
    %p237 = scmp.ne.s32.totalorder %s222, %s236
    %p238 = scmp.eq.s32.totalorder %s29, 0
    %p239 = por %p237, %p238
    %s241 = sadd.s32 %s240, 1
    %p244 = scmp.eq.s32.totalorder %s23, 1
    %p245 = scmp.ne.s32.totalorder %s240, %s242
    %p246 = scmp.eq.s32.totalorder %s23, 0
    %p247 = por %p245, %p246
    %p248 = scmp.ne.s32.totalorder %s240, %s242
    %p249 = scmp.eq.s32.totalorder %s28, 1
    %p250 = por %p248, %p249
    %p251 = scmp.ne.s32.totalorder %s242, %s243
    %p252 = scmp.eq.s32.totalorder %s28, 0
    %p253 = por %p251, %p252
    %p254 = scmp.ne.s32.totalorder %s242, %s243
    %p255 = scmp.eq.s32.totalorder %s29, 1
    %p256 = por %p254, %p255
    %p258 = scmp.ne.s32.totalorder %s243, %s257
    %p259 = scmp.eq.s32.totalorder %s29, 0
    %p260 = por %p258, %p259
    %s262 = sadd.s32 %s261, 1
    %p265 = scmp.eq.s32.totalorder %s23, 1
    %p266 = scmp.ne.s32.totalorder %s261, %s263
    %p267 = scmp.eq.s32.totalorder %s23, 0
    %p268 = por %p266, %p267
    %p269 = scmp.ne.s32.totalorder %s261, %s263
    %p270 = scmp.eq.s32.totalorder %s28, 1
    %p271 = por %p269, %p270
    %p272 = scmp.ne.s32.totalorder %s263, %s264
    %p273 = scmp.eq.s32.totalorder %s28, 0
    %p274 = por %p272, %p273
    %p275 = scmp.ne.s32.totalorder %s263, %s264
    %p276 = scmp.eq.s32.totalorder %s29, 1
    %p277 = por %p275, %p276
    %p279 = scmp.ne.s32.totalorder %s264, %s278
    %p280 = scmp.eq.s32.totalorder %s29, 0
    %p281 = por %p279, %p280
    %s283 = sadd.s32 %s282, 1
    %p286 = scmp.eq.s32.totalorder %s23, 1
    %p287 = scmp.ne.s32.totalorder %s282, %s284
    %p288 = scmp.eq.s32.totalorder %s23, 0
    %p289 = por %p287, %p288
    %p290 = scmp.ne.s32.totalorder %s282, %s284
    %p291 = scmp.eq.s32.totalorder %s28, 1
    %p292 = por %p290, %p291
    %p293 = scmp.ne.s32.totalorder %s284, %s285
    %p294 = scmp.eq.s32.totalorder %s28, 0
    %p295 = por %p293, %p294
    %p296 = scmp.ne.s32.totalorder %s284, %s285
    %p297 = scmp.eq.s32.totalorder %s29, 1
    %p298 = por %p296, %p297
    %p300 = scmp.ne.s32.totalorder %s285, %s299
    %p301 = scmp.eq.s32.totalorder %s29, 0
    %p302 = por %p300, %p301
    %s304 = sadd.s32 %s303, 1
    %p307 = scmp.eq.s32.totalorder %s23, 1
    %p308 = scmp.ne.s32.totalorder %s303, %s305
    %p309 = scmp.eq.s32.totalorder %s23, 0
    %p310 = por %p308, %p309
    %p311 = scmp.ne.s32.totalorder %s303, %s305
    %p312 = scmp.eq.s32.totalorder %s28, 1
    %p313 = por %p311, %p312
    %p314 = scmp.ne.s32.totalorder %s305, %s306
    %p315 = scmp.eq.s32.totalorder %s28, 0
    %p316 = por %p314, %p315
    %p317 = scmp.ne.s32.totalorder %s305, %s306
    %p318 = scmp.eq.s32.totalorder %s29, 1
    %p319 = por %p317, %p318
    %p321 = scmp.ne.s32.totalorder %s306, %s320
    %p322 = scmp.eq.s32.totalorder %s29, 0
    %p323 = por %p321, %p322
    %s325 = sadd.s32 %s324, 1
    %p328 = scmp.eq.s32.totalorder %s23, 1
    %p329 = scmp.ne.s32.totalorder %s324, %s326
    %p330 = scmp.eq.s32.totalorder %s23, 0
    %p331 = por %p329, %p330
    %p332 = scmp.ne.s32.totalorder %s324, %s326
    %p333 = scmp.eq.s32.totalorder %s28, 1
    %p334 = por %p332, %p333
    %p335 = scmp.ne.s32.totalorder %s326, %s327
    %p336 = scmp.eq.s32.totalorder %s28, 0
    %p337 = por %p335, %p336
    %p338 = scmp.ne.s32.totalorder %s326, %s327
    %p339 = scmp.eq.s32.totalorder %s29, 1
    %p340 = por %p338, %p339
    %p342 = scmp.ne.s32.totalorder %s327, %s341
    %p343 = scmp.eq.s32.totalorder %s29, 0
    %p344 = por %p342, %p343
    %s346 = sadd.s32 %s345, 1
    %p349 = scmp.eq.s32.totalorder %s23, 1
    %p350 = scmp.ne.s32.totalorder %s345, %s347
    %p351 = scmp.eq.s32.totalorder %s23, 0
    %p352 = por %p350, %p351
    %p353 = scmp.ne.s32.totalorder %s345, %s347
    %p354 = scmp.eq.s32.totalorder %s28, 1
    %p355 = por %p353, %p354
    %p356 = scmp.ne.s32.totalorder %s347, %s348
    %p357 = scmp.eq.s32.totalorder %s28, 0
    %p358 = por %p356, %p357
    %p359 = scmp.ne.s32.totalorder %s347, %s348
    %p360 = scmp.eq.s32.totalorder %s29, 1
    %p361 = por %p359, %p360
    %p363 = scmp.ne.s32.totalorder %s348, %s362
    %p364 = scmp.eq.s32.totalorder %s29, 0
    %p365 = por %p363, %p364
    %s367 = sadd.s32 %s366, 1
    %p370 = scmp.eq.s32.totalorder %s23, 1
    %p371 = scmp.ne.s32.totalorder %s366, %s368
    %p372 = scmp.eq.s32.totalorder %s23, 0
    %p373 = por %p371, %p372
    %p374 = scmp.ne.s32.totalorder %s366, %s368
    %p375 = scmp.eq.s32.totalorder %s28, 1
    %p376 = por %p374, %p375
    %p377 = scmp.ne.s32.totalorder %s368, %s369
    %p378 = scmp.eq.s32.totalorder %s28, 0
    %p379 = por %p377, %p378
    %p380 = scmp.ne.s32.totalorder %s368, %s369
    %p381 = scmp.eq.s32.totalorder %s29, 1
    %p382 = por %p380, %p381
    %p384 = scmp.ne.s32.totalorder %s369, %s383
    %p385 = scmp.eq.s32.totalorder %s29, 0
    %p386 = por %p384, %p385
    %s388 = sadd.s32 %s387, 1
    %p391 = scmp.eq.s32.totalorder %s23, 1
    %p392 = scmp.ne.s32.totalorder %s387, %s389
    %p393 = scmp.eq.s32.totalorder %s23, 0
    %p394 = por %p392, %p393
    %p395 = scmp.ne.s32.totalorder %s387, %s389
    %p396 = scmp.eq.s32.totalorder %s28, 1
    %p397 = por %p395, %p396
    %p398 = scmp.ne.s32.totalorder %s389, %s390
    %p399 = scmp.eq.s32.totalorder %s28, 0
    %p400 = por %p398, %p399
    %p401 = scmp.ne.s32.totalorder %s389, %s390
    %p402 = scmp.eq.s32.totalorder %s29, 1
    %p403 = por %p401, %p402
    %p405 = scmp.ne.s32.totalorder %s390, %s404
    %p406 = scmp.eq.s32.totalorder %s29, 0
    %p407 = por %p405, %p406
    %s408 = ssub.s32 %s23, %s30
    %p409 = scmp.eq.s32.totalorder %s408, 0
    %s411 = sadd.s32 %s410, 1
    %s412 = scalar_select %p409, %s410, %s411
    %p415 = pneg %p409
    %p416 = scmp.eq.s32.totalorder %s23, 1
    %p417 = por %p415, %p416
    %p418 = scmp.ne.s32.totalorder %s410, %s413
    %p419 = scmp.eq.s32.totalorder %s23, 0
    %p420 = por %p418, %p419
    %p421 = scmp.ne.s32.totalorder %s410, %s413
    %p422 = scmp.eq.s32.totalorder %s28, 1
    %p423 = por %p421, %p422
    %p424 = scmp.ne.s32.totalorder %s413, %s414
    %p425 = scmp.eq.s32.totalorder %s28, 0
    %p426 = por %p424, %p425
    %p427 = scmp.ne.s32.totalorder %s413, %s414
    %p428 = scmp.eq.s32.totalorder %s29, 1
    %p429 = por %p427, %p428
    %p431 = scmp.ne.s32.totalorder %s414, %s430
    %p432 = scmp.eq.s32.totalorder %s29, 0
    %p433 = por %p431, %p432
    %p434 = scmp.le.s32.totalorder 1, %s23
    %p435 = scmp.lt.s32.totalorder %s23, 3
    %p436 = pnand %p434, %p435
    %p437 = pneg %p436
    // Predicated region
    $region9: #{shallow_lattice_encoder_layer.1} parent=5 // pred_check
      _
    $region10: #{shallow_lattice_encoder_layer.1} parent=5 // pred_check_branch
      %439 = sbr.rel (%p436) target = $region12
    $region11: #{shallow_lattice_encoder_layer.1} parent=5 // pred_region
      %s440 = ssub.s32 %s23, 1
      // Predicated region
      $region13: #{shallow_lattice_encoder_layer.1} parent=11 // pred_check
        %p441 = pneg %p96
      $region14: #{shallow_lattice_encoder_layer.1} parent=11 // pred_check_branch
        %443 = sbr.rel (%p441) target = $region16
      $region15: #{shallow_lattice_encoder_layer.1} parent=11 // pred_region
        _
      $region16: #{shallow_lattice_encoder_layer.1} parent=11 // pred_fallthru
        _
      // Predicated region
      $region17: #{shallow_lattice_encoder_layer.1} parent=11 // pred_check
        %p444 = pneg %p117
      $region18: #{shallow_lattice_encoder_layer.1} parent=11 // pred_check_branch
        %446 = sbr.rel (%p444) target = $region20
      $region19: #{shallow_lattice_encoder_layer.1} parent=11 // pred_region
        _
      $region20: #{shallow_lattice_encoder_layer.1} parent=11 // pred_fallthru
        _
      // Predicated region
      $region21: #{shallow_lattice_encoder_layer.1} parent=11 // pred_check
        %p447 = pneg %p138
      $region22: #{shallow_lattice_encoder_layer.1} parent=11 // pred_check_branch
        %449 = sbr.rel (%p447) target = $region24
      $region23: #{shallow_lattice_encoder_layer.1} parent=11 // pred_region
        _
      $region24: #{shallow_lattice_encoder_layer.1} parent=11 // pred_fallthru
        _
      // Predicated region
      $region25: #{shallow_lattice_encoder_layer.1} parent=11 // pred_check
        %p450 = pneg %p211
      $region26: #{shallow_lattice_encoder_layer.1} parent=11 // pred_check_branch
        %452 = sbr.rel (%p450) target = $region28
      $region27: #{shallow_lattice_encoder_layer.1} parent=11 // pred_region
        _
      $region28: #{shallow_lattice_encoder_layer.1} parent=11 // pred_fallthru
        _
      // Predicated region
      $region29: #{shallow_lattice_encoder_layer.1} parent=11 // pred_check
        %p453 = pneg %p232
      $region30: #{shallow_lattice_encoder_layer.1} parent=11 // pred_check_branch
        %455 = sbr.rel (%p453) target = $region32
      $region31: #{shallow_lattice_encoder_layer.1} parent=11 // pred_region
        _
      $region32: #{shallow_lattice_encoder_layer.1} parent=11 // pred_fallthru
        _
      // Predicated region
      $region33: #{shallow_lattice_encoder_layer.1} parent=11 // pred_check
        %p456 = pneg %p253
      $region34: #{shallow_lattice_encoder_layer.1} parent=11 // pred_check_branch
        %458 = sbr.rel (%p456) target = $region36
      $region35: #{shallow_lattice_encoder_layer.1} parent=11 // pred_region
        _
      $region36: #{shallow_lattice_encoder_layer.1} parent=11 // pred_fallthru
        _
      // Predicated region
      $region37: #{shallow_lattice_encoder_layer.1} parent=11 // pred_check
        %p459 = pneg %p274
      $region38: #{shallow_lattice_encoder_layer.1} parent=11 // pred_check_branch
        %461 = sbr.rel (%p459) target = $region40
      $region39: #{shallow_lattice_encoder_layer.1} parent=11 // pred_region
        _
      $region40: #{shallow_lattice_encoder_layer.1} parent=11 // pred_fallthru
        _
      // Predicated region
      $region41: #{shallow_lattice_encoder_layer.1} parent=11 // pred_check
        %p462 = pneg %p295
      $region42: #{shallow_lattice_encoder_layer.1} parent=11 // pred_check_branch
        %464 = sbr.rel (%p462) target = $region44
      $region43: #{shallow_lattice_encoder_layer.1} parent=11 // pred_region
        _
      $region44: #{shallow_lattice_encoder_layer.1} parent=11 // pred_fallthru
        _
      // Predicated region
      $region45: #{shallow_lattice_encoder_layer.1} parent=11 // pred_check
        %p465 = pneg %p316
      $region46: #{shallow_lattice_encoder_layer.1} parent=11 // pred_check_branch
        %467 = sbr.rel (%p465) target = $region48
      $region47: #{shallow_lattice_encoder_layer.1} parent=11 // pred_region
        _
      $region48: #{shallow_lattice_encoder_layer.1} parent=11 // pred_fallthru
        _
      // Predicated region
      $region49: #{shallow_lattice_encoder_layer.1} parent=11 // pred_check
        %p468 = pneg %p337
      $region50: #{shallow_lattice_encoder_layer.1} parent=11 // pred_check_branch
        %470 = sbr.rel (%p468) target = $region52
      $region51: #{shallow_lattice_encoder_layer.1} parent=11 // pred_region
        _
      $region52: #{shallow_lattice_encoder_layer.1} parent=11 // pred_fallthru
        _
      // Predicated region
      $region53: #{shallow_lattice_encoder_layer.1} parent=11 // pred_check
        %p471 = pneg %p358
      $region54: #{shallow_lattice_encoder_layer.1} parent=11 // pred_check_branch
        %473 = sbr.rel (%p471) target = $region56
      $region55: #{shallow_lattice_encoder_layer.1} parent=11 // pred_region
        _
      $region56: #{shallow_lattice_encoder_layer.1} parent=11 // pred_fallthru
        _
      // Predicated region
      $region57: #{shallow_lattice_encoder_layer.1} parent=11 // pred_check
        %p474 = pneg %p379
      $region58: #{shallow_lattice_encoder_layer.1} parent=11 // pred_check_branch
        %476 = sbr.rel (%p474) target = $region60
      $region59: #{shallow_lattice_encoder_layer.1} parent=11 // pred_region
        _
      $region60: #{shallow_lattice_encoder_layer.1} parent=11 // pred_fallthru
        _
      // Predicated region
      $region61: #{shallow_lattice_encoder_layer.1} parent=11 // pred_check
        %p477 = pneg %p400
      $region62: #{shallow_lattice_encoder_layer.1} parent=11 // pred_check_branch
        %479 = sbr.rel (%p477) target = $region64
      $region63: #{shallow_lattice_encoder_layer.1} parent=11 // pred_region
        _
      $region64: #{shallow_lattice_encoder_layer.1} parent=11 // pred_fallthru
        _
    $region12: #{shallow_lattice_encoder_layer.1} parent=5 // pred_fallthru
      _
    %p480 = scmp.lt.s32.totalorder %s23, 2
    // Predicated region
    $region65: #{shallow_lattice_encoder_layer.1} parent=5 // pred_check
      %p481 = pneg %p480
    $region66: #{shallow_lattice_encoder_layer.1} parent=5 // pred_check_branch
      %483 = sbr.rel (%p481) target = $region68
    $region67: #{shallow_lattice_encoder_layer.1} parent=5 // pred_region
      // Predicated region
      $region69: #{shallow_lattice_encoder_layer.1} parent=67 // pred_check
        %p484 = pneg %p43
      $region70: #{shallow_lattice_encoder_layer.1} parent=67 // pred_check_branch
        %486 = sbr.rel (%p484) target = $region72
      $region71: #{shallow_lattice_encoder_layer.1} parent=67 // pred_region
        %s487 = smul.u32 16, %s23
        %p488 = scmp.lt.s32.totalorder %s487, 31
        %s489 = scalar_select %p488, %s487, 31
        %s490 = smul.addr %s489, 2
        %s491 = smul.addr %s490, 8
        %s492 = scalar_lea.vmem %s0, %s491
        %s493 = smul.u32 16, %s23
      $region72: #{shallow_lattice_encoder_layer.1} parent=67 // pred_fallthru
        _
      // Predicated region
      $region73: #{shallow_lattice_encoder_layer.1} parent=67 // pred_check
        %p494 = pneg %p69
      $region74: #{shallow_lattice_encoder_layer.1} parent=67 // pred_check_branch
        %496 = sbr.rel (%p494) target = $region76
      $region75: #{shallow_lattice_encoder_layer.1} parent=67 // pred_region
        %s497 = smul.u32 16, %s23
        %p498 = scmp.lt.s32.totalorder %s497, 31
        %s499 = scalar_select %p498, %s497, 31
        %s500 = smul.addr %s499, 2
        %s501 = smul.addr %s500, 8
        %s502 = scalar_lea.vmem %s1, %s501
        %s503 = smul.u32 16, %s23
      $region76: #{shallow_lattice_encoder_layer.1} parent=67 // pred_fallthru
        _
      // Predicated region
      $region77: #{shallow_lattice_encoder_layer.1} parent=67 // pred_check
        %p504 = pneg %p158
      $region78: #{shallow_lattice_encoder_layer.1} parent=67 // pred_check_branch
        %506 = sbr.rel (%p504) target = $region80
      $region79: #{shallow_lattice_encoder_layer.1} parent=67 // pred_region
        %s507 = smul.u32 16, %s23
        %p508 = scmp.lt.s32.totalorder %s507, 31
        %s509 = scalar_select %p508, %s507, 31
        %s510 = smul.addr %s509, 8
        %s511 = scalar_lea.vmem %s5, %s510
        %s512 = smul.u32 16, %s23
      $region80: #{shallow_lattice_encoder_layer.1} parent=67 // pred_fallthru
        _
      // Predicated region
      $region81: #{shallow_lattice_encoder_layer.1} parent=67 // pred_check
        %p513 = pneg %p184
      $region82: #{shallow_lattice_encoder_layer.1} parent=67 // pred_check_branch
        %515 = sbr.rel (%p513) target = $region84
      $region83: #{shallow_lattice_encoder_layer.1} parent=67 // pred_region
        %s516 = smul.u32 16, %s23
        %p517 = scmp.lt.s32.totalorder %s516, 31
        %s518 = scalar_select %p517, %s516, 31
        %s519 = smul.addr %s518, 8
        %s520 = scalar_lea.vmem %s6, %s519
        %s521 = smul.u32 16, %s23
      $region84: #{shallow_lattice_encoder_layer.1} parent=67 // pred_fallthru
        _
    $region68: #{shallow_lattice_encoder_layer.1} parent=5 // pred_fallthru
      _
    %p522 = scmp.le.s32.totalorder 1, %s23
    %p523 = scmp.lt.s32.totalorder %s23, 3
    %p524 = pnand %p522, %p523
    %p525 = pneg %p524
    // Predicated region
    $region85: #{shallow_lattice_encoder_layer.1} parent=5 // pred_check
      _
    $region86: #{shallow_lattice_encoder_layer.1} parent=5 // pred_check_branch
      %527 = sbr.rel (%p524) target = $region88
    $region87: #{shallow_lattice_encoder_layer.1} parent=5 // pred_region
      %s528 = ssub.s32 %s23, 1
      %s529 = smul.u32 16, %s28
      %p530 = scmp.lt.s32.totalorder %s529, 31
      %s531 = scalar_select %p530, %s529, 31
      %s532 = smul.addr %s531, 2
      %s533 = smul.addr %s532, 8
      %s534 = scalar_lea.vmem %s0, %s533
      %p535 = pneg %p49
      %p536 = pneg %p46
      %s537 = smul.u32 16, %s28
      %p538 = scmp.lt.s32.totalorder %s537, 31
      %s539 = scalar_select %p538, %s537, 31
      %s540 = smul.addr %s539, 2
      %s541 = smul.addr %s540, 8
      %s542 = scalar_lea.vmem %s1, %s541
      %p543 = pneg %p75
      %p544 = pneg %p72
      %p545 = pneg %p96
      %p546 = pneg %p93
      %p547 = pneg %p117
      %p548 = pneg %p114
      %p549 = pneg %p138
      %p550 = pneg %p135
      %s551 = smul.u32 16, %s28
      %p552 = scmp.lt.s32.totalorder %s551, 31
      %s553 = scalar_select %p552, %s551, 31
      %s554 = smul.addr %s553, 8
      %s555 = scalar_lea.vmem %s5, %s554
      %p556 = pneg %p164
      %p557 = pneg %p161
      %s558 = smul.u32 16, %s28
      %p559 = scmp.lt.s32.totalorder %s558, 31
      %s560 = scalar_select %p559, %s558, 31
      %s561 = smul.addr %s560, 8
      %s562 = scalar_lea.vmem %s6, %s561
      %p563 = pneg %p190
      %p564 = pneg %p187
      %p565 = pneg %p211
      %p566 = pneg %p208
      %p567 = pneg %p232
      %p568 = pneg %p229
      %p569 = pneg %p253
      %p570 = pneg %p250
      %p571 = pneg %p274
      %p572 = pneg %p271
      %p573 = pneg %p295
      %p574 = pneg %p292
      %p575 = pneg %p316
      %p576 = pneg %p313
      %p577 = pneg %p337
      %p578 = pneg %p334
      %p579 = pneg %p358
      %p580 = pneg %p355
      %p581 = pneg %p379
      %p582 = pneg %p376
      %p583 = pneg %p400
      %p584 = pneg %p397
      %p585 = pneg %p426
      %p586 = pneg %p423
      %s587 = smul.u32 16, %s28
      %p588 = scmp.lt.s32.totalorder %s587, 31
      %s589 = scalar_select %p588, %s587, 31
      %s590 = smul.addr %s589, 8
      %s591 = scalar_lea.vmem %s17, %s590
      %s592 = smul.u32 16, %s28
      %p593 = scmp.lt.s32.totalorder %s592, 31
      %s594 = scalar_select %p593, %s592, 31
      %s595 = smul.addr %s594, 2
      %s596 = smul.addr %s595, 8
      %s597 = scalar_lea.vmem %s0, %s596
      %s598 = smul.u32 16, %s28
      %s599 = smul.u32 16, %s28
      %p600 = scmp.lt.s32.totalorder %s599, 31
      %s601 = scalar_select %p600, %s599, 31
      %s602 = smul.addr %s601, 2
      %s603 = smul.addr %s602, 8
      %s604 = scalar_lea.vmem %s1, %s603
      %s605 = smul.u32 16, %s28
      %s606 = smul.u32 16, %s28
      %p607 = scmp.lt.s32.totalorder %s606, 31
      %s608 = scalar_select %p607, %s606, 31
      %s609 = smul.addr %s608, 8
      %s610 = scalar_lea.vmem %s5, %s609
      %s611 = smul.u32 16, %s28
      %s612 = smul.u32 16, %s28
      %p613 = scmp.lt.s32.totalorder %s612, 31
      %s614 = scalar_select %p613, %s612, 31
      %s615 = smul.addr %s614, 8
      %s616 = scalar_lea.vmem %s6, %s615
      %s617 = smul.u32 16, %s28
      %s618 = smul.u32 16, %s28
      %p619 = scmp.lt.s32.totalorder %s618, 31
      %s620 = scalar_select %p619, %s618, 31
      %s621 = smul.addr %s620, 8
      %s622 = scalar_lea.vmem %s17, %s621
      %s623 = smul.u32 16, %s28
      %v624 = vld [vmem:[%s2] sm:$0xff]
      %v625 = vld [vmem:[%s2 + $0x8] sm:$0xff]
      %v626 = vld [vmem:[%s2 + $0x10] sm:$0xff]
      %v627 = vld [vmem:[%s2 + $0x18] sm:$0xff]
      %v628 = vld [vmem:[%s2 + $0x20] sm:$0xff]
      %v629 = vld [vmem:[%s2 + $0x28] sm:$0xff]
      %v630 = vld [vmem:[%s2 + $0x30] sm:$0xff]
      %v631 = vld [vmem:[%s2 + $0x38] sm:$0xff]
      %v632 = vld [vmem:[%s2 + $0x40] sm:$0xff]
      %v633 = vld [vmem:[%s2 + $0x48] sm:$0xff]
      %v634 = vld [vmem:[%s2 + $0x50] sm:$0xff]
      %v635 = vld [vmem:[%s2 + $0x58] sm:$0xff]
      %v636 = vld [vmem:[%s2 + $0x60] sm:$0xff]
      %v637 = vld [vmem:[%s2 + $0x68] sm:$0xff]
      %v638 = vld [vmem:[%s2 + $0x70] sm:$0xff]
      %v639 = vld [vmem:[%s2 + $0x78] sm:$0xff]
      %v640 = vld [vmem:[%s2 + $0x80] sm:$0xff]
      %v641 = vld [vmem:[%s2 + $0x88] sm:$0xff]
      %v642 = vld [vmem:[%s2 + $0x90] sm:$0xff]
      %v643 = vld [vmem:[%s2 + $0x98] sm:$0xff]
      %v644 = vld [vmem:[%s2 + $0xa0] sm:$0xff]
      %v645 = vld [vmem:[%s2 + $0xa8] sm:$0xff]
      %v646 = vld [vmem:[%s2 + $0xb0] sm:$0xff]
      %v647 = vld [vmem:[%s2 + $0xb8] sm:$0xff]
      %v648 = vld [vmem:[%s2 + $0xc0] sm:$0xff]
      %v649 = vld [vmem:[%s2 + $0xc8] sm:$0xff]
      %v650 = vld [vmem:[%s2 + $0xd0] sm:$0xff]
      %v651 = vld [vmem:[%s2 + $0xd8] sm:$0xff]
      %v652 = vld [vmem:[%s2 + $0xe0] sm:$0xff]
      %v653 = vld [vmem:[%s2 + $0xe8] sm:$0xff]
      %v654 = vld [vmem:[%s2 + $0xf0] sm:$0xff]
      %v655 = vld [vmem:[%s2 + $0xf8] sm:$0xff]
      %v656 = vld [vmem:[%s7] sm:$0xff]
      %v657 = vld [vmem:[%s7 + $0x8] sm:$0xff]
      %v658 = vld [vmem:[%s7 + $0x10] sm:$0xff]
      %v659 = vld [vmem:[%s7 + $0x18] sm:$0xff]
      %v660 = vld [vmem:[%s7 + $0x20] sm:$0xff]
      %v661 = vld [vmem:[%s7 + $0x28] sm:$0xff]
      %v662 = vld [vmem:[%s7 + $0x30] sm:$0xff]
      %v663 = vld [vmem:[%s7 + $0x38] sm:$0xff]
      %v664 = vld [vmem:[%s7 + $0x40] sm:$0xff]
      %v665 = vld [vmem:[%s7 + $0x48] sm:$0xff]
      %v666 = vld [vmem:[%s7 + $0x50] sm:$0xff]
      %v667 = vld [vmem:[%s7 + $0x58] sm:$0xff]
      %v668 = vld [vmem:[%s7 + $0x60] sm:$0xff]
      %v669 = vld [vmem:[%s7 + $0x68] sm:$0xff]
      %v670 = vld [vmem:[%s7 + $0x70] sm:$0xff]
      %v671 = vld [vmem:[%s7 + $0x78] sm:$0xff]
      %vm672 = vcmask 523264
      %v674 = vsel %vm672, %v624, 0
      %v677 = vsel %vm672, %v625, 0
      %v680 = vsel %vm672, %v626, 0
      %v683 = vsel %vm672, %v627, 0
      %v686 = vsel %vm672, %v628, 0
      %v689 = vsel %vm672, %v629, 0
      %v692 = vsel %vm672, %v630, 0
      %v695 = vsel %vm672, %v631, 0
      %v698 = vsel %vm672, %v632, 0
      %v701 = vsel %vm672, %v633, 0
      %v704 = vsel %vm672, %v634, 0
      %v707 = vsel %vm672, %v635, 0
      %v710 = vsel %vm672, %v636, 0
      %v713 = vsel %vm672, %v637, 0
      %v716 = vsel %vm672, %v638, 0
      %v719 = vsel %vm672, %v639, 0
      %v722 = vsel %vm672, %v640, 0
      %v725 = vsel %vm672, %v641, 0
      %v728 = vsel %vm672, %v642, 0
      %v731 = vsel %vm672, %v643, 0
      %v734 = vsel %vm672, %v644, 0
      %v737 = vsel %vm672, %v645, 0
      %v740 = vsel %vm672, %v646, 0
      %v743 = vsel %vm672, %v647, 0
      %v746 = vsel %vm672, %v648, 0
      %v749 = vsel %vm672, %v649, 0
      %v752 = vsel %vm672, %v650, 0
      %v755 = vsel %vm672, %v651, 0
      %v758 = vsel %vm672, %v652, 0
      %v761 = vsel %vm672, %v653, 0
      %v764 = vsel %vm672, %v654, 0
      %v767 = vsel %vm672, %v655, 0
      %769 = vmatprep.subr.mxu0 %v657
      %770 = vmatpush1.msra.mxu0 %v656
      %771 = vmatprep.subr.mxu0 %v659
      %772 = vmatpush1.msra.mxu0 %v658
      %773 = vmatprep.subr.mxu0 %v661
      %774 = vmatpush1.msra.mxu0 %v660
      %775 = vmatprep.subr.mxu0 %v663
      %776 = vmatpush1.msra.mxu0 %v662
      %777 = vmatprep.subr.mxu0 %v665
      %778 = vmatpush1.msra.mxu0 %v664
      %779 = vmatprep.subr.mxu0 %v667
      %780 = vmatpush1.msra.mxu0 %v666
      %781 = vmatprep.subr.mxu0 %v669
      %782 = vmatpush1.msra.mxu0 %v668
      %783 = vmatprep.subr.mxu0 %v671
      %784 = vmatpush1.msra.mxu0 %v670
      %785 = vmatprep.subr.mxu0 0.0
      %786 = vmatpush1.msra.mxu0 0.0
      %787 = vmatprep.subr.mxu0 0.0
      %788 = vmatpush1.msra.mxu0 0.0
      %789 = vmatprep.subr.mxu0 0.0
      %790 = vmatpush1.msra.mxu0 0.0
      %791 = vmatprep.subr.mxu0 0.0
      %792 = vmatpush1.msra.mxu0 0.0
      %793 = vmatprep.subr.mxu0 0.0
      %794 = vmatpush1.msra.mxu0 0.0
      %795 = vmatprep.subr.mxu0 0.0
      %796 = vmatpush1.msra.mxu0 0.0
      %797 = vmatprep.subr.mxu0 0.0
      %798 = vmatpush1.msra.mxu0 0.0
      %799 = vmatprep.subr.mxu0 0.0
      %800 = vmatpush1.msra.mxu0 0.0
      %801 = vmatprep.subr.mxu0 0.0
      %802 = vmatpush1.msra.mxu0 0.0
      %803 = vmatprep.subr.mxu0 0.0
      %804 = vmatpush1.msra.mxu0 0.0
      %805 = vmatprep.subr.mxu0 0.0
      %806 = vmatpush1.msra.mxu0 0.0
      %807 = vmatprep.subr.mxu0 0.0
      %808 = vmatpush1.msra.mxu0 0.0
      %809 = vmatprep.subr.mxu0 0.0
      %810 = vmatpush1.msra.mxu0 0.0
      %811 = vmatprep.subr.mxu0 0.0
      %812 = vmatpush1.msra.mxu0 0.0
      %813 = vmatprep.subr.mxu0 0.0
      %814 = vmatpush1.msra.mxu0 0.0
      %815 = vmatprep.subr.mxu0 0.0
      %816 = vmatpush1.msra.mxu0 0.0
      %817 = vmatprep.subr.mxu0 0.0
      %818 = vmatpush1.msra.mxu0 0.0
      %819 = vmatprep.subr.mxu0 0.0
      %820 = vmatpush1.msra.mxu0 0.0
      %821 = vmatprep.subr.mxu0 0.0
      %822 = vmatpush1.msra.mxu0 0.0
      %823 = vmatprep.subr.mxu0 0.0
      %824 = vmatpush1.msra.mxu0 0.0
      %825 = vmatprep.subr.mxu0 0.0
      %826 = vmatpush1.msra.mxu0 0.0
      %827 = vmatprep.subr.mxu0 0.0
      %828 = vmatpush1.msra.mxu0 0.0
      %829 = vmatprep.subr.mxu0 0.0
      %830 = vmatpush1.msra.mxu0 0.0
      %831 = vmatprep.subr.mxu0 0.0
      %832 = vmatpush1.msra.mxu0 0.0
      %833 = vmatprep.mubr.f32.mxu0 0.0
      %834 = vmatmul.mubr.f32.gmra.mrb[0].mxu0 %v674
      %v835 = vpop.f32.mrb[0].mxu0
      %v836 = vadd.f32 0.0, %v835
      %v837 = vpop.f32.mrb[0].mxu0
      %v838 = vadd.f32 0.0, %v837
      %839 = vmatprep.mubr.f32.mxu0 0.0
      %840 = vmatmul.mubr.f32.gmra.mrb[0].mxu0 %v677
      %v841 = vpop.f32.mrb[0].mxu0
      %v842 = vadd.f32 0.0, %v841
      %v843 = vpop.f32.mrb[0].mxu0
      %v844 = vadd.f32 0.0, %v843
      %845 = vmatprep.mubr.f32.mxu0 0.0
      %846 = vmatmul.mubr.f32.gmra.mrb[0].mxu0 %v680
      %v847 = vpop.f32.mrb[0].mxu0
      %v848 = vadd.f32 0.0, %v847
      %v849 = vpop.f32.mrb[0].mxu0
      %v850 = vadd.f32 0.0, %v849
      %851 = vmatprep.mubr.f32.mxu0 0.0
      %852 = vmatmul.mubr.f32.gmra.mrb[0].mxu0 %v683
      %v853 = vpop.f32.mrb[0].mxu0
      %v854 = vadd.f32 0.0, %v853
      %v855 = vpop.f32.mrb[0].mxu0
      %v856 = vadd.f32 0.0, %v855
      %857 = vmatprep.mubr.f32.mxu0 0.0
      %858 = vmatmul.mubr.f32.gmra.mrb[0].mxu0 %v686
      %v859 = vpop.f32.mrb[0].mxu0
      %v860 = vadd.f32 0.0, %v859
      %v861 = vpop.f32.mrb[0].mxu0
      %v862 = vadd.f32 0.0, %v861
      %863 = vmatprep.mubr.f32.mxu0 0.0
      %864 = vmatmul.mubr.f32.gmra.mrb[0].mxu0 %v689
      %v865 = vpop.f32.mrb[0].mxu0
      %v866 = vadd.f32 0.0, %v865
      %v867 = vpop.f32.mrb[0].mxu0
      %v868 = vadd.f32 0.0, %v867
      %869 = vmatprep.mubr.f32.mxu0 0.0
      %870 = vmatmul.mubr.f32.gmra.mrb[0].mxu0 %v692
      %v871 = vpop.f32.mrb[0].mxu0
      %v872 = vadd.f32 0.0, %v871
      %v873 = vpop.f32.mrb[0].mxu0
      %v874 = vadd.f32 0.0, %v873
      %875 = vmatprep.mubr.f32.mxu0 0.0
      %876 = vmatmul.mubr.f32.gmra.mrb[0].mxu0 %v695
      %v877 = vpop.f32.mrb[0].mxu0
      %v878 = vadd.f32 0.0, %v877
      %v879 = vpop.f32.mrb[0].mxu0
      %v880 = vadd.f32 0.0, %v879
      %881 = vmatprep.mubr.f32.mxu0 0.0
      %882 = vmatmul.mubr.f32.gmra.mrb[0].mxu0 %v698
      %v883 = vpop.f32.mrb[0].mxu0
      %v884 = vadd.f32 0.0, %v883
      %v885 = vpop.f32.mrb[0].mxu0
      %v886 = vadd.f32 0.0, %v885
      %887 = vmatprep.mubr.f32.mxu0 0.0
      %888 = vmatmul.mubr.f32.gmra.mrb[0].mxu0 %v701
      %v889 = vpop.f32.mrb[0].mxu0
      %v890 = vadd.f32 0.0, %v889
      %v891 = vpop.f32.mrb[0].mxu0
      %v892 = vadd.f32 0.0, %v891
      %893 = vmatprep.mubr.f32.mxu0 0.0
      %894 = vmatmul.mubr.f32.gmra.mrb[0].mxu0 %v704
      %v895 = vpop.f32.mrb[0].mxu0
      %v896 = vadd.f32 0.0, %v895
      %v897 = vpop.f32.mrb[0].mxu0
      %v898 = vadd.f32 0.0, %v897
      %899 = vmatprep.mubr.f32.mxu0 0.0
      %900 = vmatmul.mubr.f32.gmra.mrb[0].mxu0 %v707
      %v901 = vpop.f32.mrb[0].mxu0
      %v902 = vadd.f32 0.0, %v901
      %v903 = vpop.f32.mrb[0].mxu0
      %v904 = vadd.f32 0.0, %v903
      %905 = vmatprep.mubr.f32.mxu0 0.0
      %906 = vmatmul.mubr.f32.gmra.mrb[0].mxu0 %v710
      %v907 = vpop.f32.mrb[0].mxu0
      %v908 = vadd.f32 0.0, %v907
      %v909 = vpop.f32.mrb[0].mxu0
      %v910 = vadd.f32 0.0, %v909
      %911 = vmatprep.mubr.f32.mxu0 0.0
      %912 = vmatmul.mubr.f32.gmra.mrb[0].mxu0 %v713
      %v913 = vpop.f32.mrb[0].mxu0
      %v914 = vadd.f32 0.0, %v913
      %v915 = vpop.f32.mrb[0].mxu0
      %v916 = vadd.f32 0.0, %v915
      %917 = vmatprep.mubr.f32.mxu0 0.0
      %918 = vmatmul.mubr.f32.gmra.mrb[0].mxu0 %v716
      %v919 = vpop.f32.mrb[0].mxu0
      %v920 = vadd.f32 0.0, %v919
      %v921 = vpop.f32.mrb[0].mxu0
      %v922 = vadd.f32 0.0, %v921
      %923 = vmatprep.mubr.f32.mxu0 0.0
      %924 = vmatmul.mubr.f32.gmra.mrb[0].mxu0 %v719
      %v925 = vpop.f32.mrb[0].mxu0
      %v926 = vadd.f32 0.0, %v925
      %v927 = vpop.f32.mrb[0].mxu0
      %v928 = vadd.f32 0.0, %v927
      %929 = vmatprep.mubr.f32.mxu0 0.0
      %930 = vmatmul.mubr.f32.gmra.mrb[0].mxu0 %v722
      %v931 = vpop.f32.mrb[0].mxu0
      %v932 = vadd.f32 0.0, %v931
      %v933 = vpop.f32.mrb[0].mxu0
      %v934 = vadd.f32 0.0, %v933
      %935 = vmatprep.mubr.f32.mxu0 0.0
      %936 = vmatmul.mubr.f32.gmra.mrb[0].mxu0 %v725
      %v937 = vpop.f32.mrb[0].mxu0
      %v938 = vadd.f32 0.0, %v937
      %v939 = vpop.f32.mrb[0].mxu0
      %v940 = vadd.f32 0.0, %v939
      %941 = vmatprep.mubr.f32.mxu0 0.0
      %942 = vmatmul.mubr.f32.gmra.mrb[0].mxu0 %v728
      %v943 = vpop.f32.mrb[0].mxu0
      %v944 = vadd.f32 0.0, %v943
      %v945 = vpop.f32.mrb[0].mxu0
      %v946 = vadd.f32 0.0, %v945
      %947 = vmatprep.mubr.f32.mxu0 0.0
      %948 = vmatmul.mubr.f32.gmra.mrb[0].mxu0 %v731
      %v949 = vpop.f32.mrb[0].mxu0
      %v950 = vadd.f32 0.0, %v949
      %v951 = vpop.f32.mrb[0].mxu0
      %v952 = vadd.f32 0.0, %v951
      %953 = vmatprep.mubr.f32.mxu0 0.0
      %954 = vmatmul.mubr.f32.gmra.mrb[0].mxu0 %v734
      %v955 = vpop.f32.mrb[0].mxu0
      %v956 = vadd.f32 0.0, %v955
      %v957 = vpop.f32.mrb[0].mxu0
      %v958 = vadd.f32 0.0, %v957
      %959 = vmatprep.mubr.f32.mxu0 0.0
      %960 = vmatmul.mubr.f32.gmra.mrb[0].mxu0 %v737
      %v961 = vpop.f32.mrb[0].mxu0
      %v962 = vadd.f32 0.0, %v961
      %v963 = vpop.f32.mrb[0].mxu0
      %v964 = vadd.f32 0.0, %v963
      %965 = vmatprep.mubr.f32.mxu0 0.0
      %966 = vmatmul.mubr.f32.gmra.mrb[0].mxu0 %v740
      %v967 = vpop.f32.mrb[0].mxu0
      %v968 = vadd.f32 0.0, %v967
      %v969 = vpop.f32.mrb[0].mxu0
      %v970 = vadd.f32 0.0, %v969
      %971 = vmatprep.mubr.f32.mxu0 0.0
      %972 = vmatmul.mubr.f32.gmra.mrb[0].mxu0 %v743
      %v973 = vpop.f32.mrb[0].mxu0
      %v974 = vadd.f32 0.0, %v973
      %v975 = vpop.f32.mrb[0].mxu0
      %v976 = vadd.f32 0.0, %v975
      %977 = vmatprep.mubr.f32.mxu0 0.0
      %978 = vmatmul.mubr.f32.gmra.mrb[0].mxu0 %v746
      %v979 = vpop.f32.mrb[0].mxu0
      %v980 = vadd.f32 0.0, %v979
      %v981 = vpop.f32.mrb[0].mxu0
      %v982 = vadd.f32 0.0, %v981
      %983 = vmatprep.mubr.f32.mxu0 0.0
      %984 = vmatmul.mubr.f32.gmra.mrb[0].mxu0 %v749
      %v985 = vpop.f32.mrb[0].mxu0
      %v986 = vadd.f32 0.0, %v985
      %v987 = vpop.f32.mrb[0].mxu0
      %v988 = vadd.f32 0.0, %v987
      %989 = vmatprep.mubr.f32.mxu0 0.0
      %990 = vmatmul.mubr.f32.gmra.mrb[0].mxu0 %v752
      %v991 = vpop.f32.mrb[0].mxu0
      %v992 = vadd.f32 0.0, %v991
      %v993 = vpop.f32.mrb[0].mxu0
      %v994 = vadd.f32 0.0, %v993
      %995 = vmatprep.mubr.f32.mxu0 0.0
      %996 = vmatmul.mubr.f32.gmra.mrb[0].mxu0 %v755
      %v997 = vpop.f32.mrb[0].mxu0
      %v998 = vadd.f32 0.0, %v997
      %v999 = vpop.f32.mrb[0].mxu0
      %v1000 = vadd.f32 0.0, %v999
      %1001 = vmatprep.mubr.f32.mxu0 0.0
      %1002 = vmatmul.mubr.f32.gmra.mrb[0].mxu0 %v758
      %v1003 = vpop.f32.mrb[0].mxu0
      %v1004 = vadd.f32 0.0, %v1003
      %v1005 = vpop.f32.mrb[0].mxu0
      %v1006 = vadd.f32 0.0, %v1005
      %1007 = vmatprep.mubr.f32.mxu0 0.0
      %1008 = vmatmul.mubr.f32.gmra.mrb[0].mxu0 %v761
      %v1009 = vpop.f32.mrb[0].mxu0
      %v1010 = vadd.f32 0.0, %v1009
      %v1011 = vpop.f32.mrb[0].mxu0
      %v1012 = vadd.f32 0.0, %v1011
      %1013 = vmatprep.mubr.f32.mxu0 0.0
      %1014 = vmatmul.mubr.f32.gmra.mrb[0].mxu0 %v764
      %v1015 = vpop.f32.mrb[0].mxu0
      %v1016 = vadd.f32 0.0, %v1015
      %v1017 = vpop.f32.mrb[0].mxu0
      %v1018 = vadd.f32 0.0, %v1017
      %1019 = vmatprep.mubr.f32.mxu0 0.0
      %1020 = vmatmul.mubr.f32.gmra.mrb[0].mxu0 %v767
      %v1021 = vpop.f32.mrb[0].mxu0
      %v1022 = vadd.f32 0.0, %v1021
      %v1023 = vpop.f32.mrb[0].mxu0
      %v1024 = vadd.f32 0.0, %v1023
      %1025 = vdwg.mxu0
      %v1026 = vld [vmem:[%s3] sm:$0xff]
      %v1027 = vld [vmem:[%s3 + $0x8] sm:$0xff]
      %v1028 = vld [vmem:[%s3 + $0x10] sm:$0xff]
      %v1029 = vld [vmem:[%s3 + $0x18] sm:$0xff]
      %v1030 = vld [vmem:[%s3 + $0x20] sm:$0xff]
      %v1031 = vld [vmem:[%s3 + $0x28] sm:$0xff]
      %v1032 = vld [vmem:[%s3 + $0x30] sm:$0xff]
      %v1033 = vld [vmem:[%s3 + $0x38] sm:$0xff]
      %v1034 = vld [vmem:[%s3 + $0x40] sm:$0xff]
      %v1035 = vld [vmem:[%s3 + $0x48] sm:$0xff]
      %v1036 = vld [vmem:[%s3 + $0x50] sm:$0xff]
      %v1037 = vld [vmem:[%s3 + $0x58] sm:$0xff]
      %v1038 = vld [vmem:[%s3 + $0x60] sm:$0xff]
      %v1039 = vld [vmem:[%s3 + $0x68] sm:$0xff]
      %v1040 = vld [vmem:[%s3 + $0x70] sm:$0xff]
      %v1041 = vld [vmem:[%s3 + $0x78] sm:$0xff]
      %v1042 = vld [vmem:[%s3 + $0x80] sm:$0xff]
      %v1043 = vld [vmem:[%s3 + $0x88] sm:$0xff]
      %v1044 = vld [vmem:[%s3 + $0x90] sm:$0xff]
      %v1045 = vld [vmem:[%s3 + $0x98] sm:$0xff]
      %v1046 = vld [vmem:[%s3 + $0xa0] sm:$0xff]
      %v1047 = vld [vmem:[%s3 + $0xa8] sm:$0xff]
      %v1048 = vld [vmem:[%s3 + $0xb0] sm:$0xff]
      %v1049 = vld [vmem:[%s3 + $0xb8] sm:$0xff]
      %v1050 = vld [vmem:[%s3 + $0xc0] sm:$0xff]
      %v1051 = vld [vmem:[%s3 + $0xc8] sm:$0xff]
      %v1052 = vld [vmem:[%s3 + $0xd0] sm:$0xff]
      %v1053 = vld [vmem:[%s3 + $0xd8] sm:$0xff]
      %v1054 = vld [vmem:[%s3 + $0xe0] sm:$0xff]
      %v1055 = vld [vmem:[%s3 + $0xe8] sm:$0xff]
      %v1056 = vld [vmem:[%s3 + $0xf0] sm:$0xff]
      %v1057 = vld [vmem:[%s3 + $0xf8] sm:$0xff]
      %1059 = vset.pattern.permute.xlu0 0
      %1060 = vperm.xlu0 %1059, %v1026
      %v1061 = vpop.permute.xlu0 %1060
      %1064 = vset.pattern.permute.xlu0 0
      %1065 = vperm.xlu0 %1064, %v1027
      %v1066 = vpop.permute.xlu0 %1065
      %1069 = vset.pattern.permute.xlu0 0
      %1070 = vperm.xlu0 %1069, %v1028
      %v1071 = vpop.permute.xlu0 %1070
      %1074 = vset.pattern.permute.xlu0 0
      %1075 = vperm.xlu0 %1074, %v1029
      %v1076 = vpop.permute.xlu0 %1075
      %1079 = vset.pattern.permute.xlu0 0
      %1080 = vperm.xlu0 %1079, %v1030
      %v1081 = vpop.permute.xlu0 %1080
      %1084 = vset.pattern.permute.xlu0 0
      %1085 = vperm.xlu0 %1084, %v1031
      %v1086 = vpop.permute.xlu0 %1085
      %1089 = vset.pattern.permute.xlu0 0
      %1090 = vperm.xlu0 %1089, %v1032
      %v1091 = vpop.permute.xlu0 %1090
      %1094 = vset.pattern.permute.xlu0 0
      %1095 = vperm.xlu0 %1094, %v1033
      %v1096 = vpop.permute.xlu0 %1095
      %1099 = vset.pattern.permute.xlu0 0
      %1100 = vperm.xlu0 %1099, %v1034
      %v1101 = vpop.permute.xlu0 %1100
      %1104 = vset.pattern.permute.xlu0 0
      %1105 = vperm.xlu0 %1104, %v1035
      %v1106 = vpop.permute.xlu0 %1105
      %1109 = vset.pattern.permute.xlu0 0
      %1110 = vperm.xlu0 %1109, %v1036
      %v1111 = vpop.permute.xlu0 %1110
      %1114 = vset.pattern.permute.xlu0 0
      %1115 = vperm.xlu0 %1114, %v1037
      %v1116 = vpop.permute.xlu0 %1115
      %1119 = vset.pattern.permute.xlu0 0
      %1120 = vperm.xlu0 %1119, %v1038
      %v1121 = vpop.permute.xlu0 %1120
      %1124 = vset.pattern.permute.xlu0 0
      %1125 = vperm.xlu0 %1124, %v1039
      %v1126 = vpop.permute.xlu0 %1125
      %1129 = vset.pattern.permute.xlu0 0
      %1130 = vperm.xlu0 %1129, %v1040
      %v1131 = vpop.permute.xlu0 %1130
      %1134 = vset.pattern.permute.xlu0 0
      %1135 = vperm.xlu0 %1134, %v1041
      %v1136 = vpop.permute.xlu0 %1135
      %1139 = vset.pattern.permute.xlu0 0
      %1140 = vperm.xlu0 %1139, %v1042
      %v1141 = vpop.permute.xlu0 %1140
      %1144 = vset.pattern.permute.xlu0 0
      %1145 = vperm.xlu0 %1144, %v1043
      %v1146 = vpop.permute.xlu0 %1145
      %1149 = vset.pattern.permute.xlu0 0
      %1150 = vperm.xlu0 %1149, %v1044
      %v1151 = vpop.permute.xlu0 %1150
      %1154 = vset.pattern.permute.xlu0 0
      %1155 = vperm.xlu0 %1154, %v1045
      %v1156 = vpop.permute.xlu0 %1155
      %1159 = vset.pattern.permute.xlu0 0
      %1160 = vperm.xlu0 %1159, %v1046
      %v1161 = vpop.permute.xlu0 %1160
      %1164 = vset.pattern.permute.xlu0 0
      %1165 = vperm.xlu0 %1164, %v1047
      %v1166 = vpop.permute.xlu0 %1165
      %1169 = vset.pattern.permute.xlu0 0
      %1170 = vperm.xlu0 %1169, %v1048
      %v1171 = vpop.permute.xlu0 %1170
      %1174 = vset.pattern.permute.xlu0 0
      %1175 = vperm.xlu0 %1174, %v1049
      %v1176 = vpop.permute.xlu0 %1175
      %1179 = vset.pattern.permute.xlu0 0
      %1180 = vperm.xlu0 %1179, %v1050
      %v1181 = vpop.permute.xlu0 %1180
      %1184 = vset.pattern.permute.xlu0 0
      %1185 = vperm.xlu0 %1184, %v1051
      %v1186 = vpop.permute.xlu0 %1185
      %1189 = vset.pattern.permute.xlu0 0
      %1190 = vperm.xlu0 %1189, %v1052
      %v1191 = vpop.permute.xlu0 %1190
      %1194 = vset.pattern.permute.xlu0 0
      %1195 = vperm.xlu0 %1194, %v1053
      %v1196 = vpop.permute.xlu0 %1195
      %1199 = vset.pattern.permute.xlu0 0
      %1200 = vperm.xlu0 %1199, %v1054
      %v1201 = vpop.permute.xlu0 %1200
      %1204 = vset.pattern.permute.xlu0 0
      %1205 = vperm.xlu0 %1204, %v1055
      %v1206 = vpop.permute.xlu0 %1205
      %1209 = vset.pattern.permute.xlu0 0
      %1210 = vperm.xlu0 %1209, %v1056
      %v1211 = vpop.permute.xlu0 %1210
      %1214 = vset.pattern.permute.xlu0 0
      %1215 = vperm.xlu0 %1214, %v1057
      %v1216 = vpop.permute.xlu0 %1215
      %v1218 = vmul.f32 %v836, %v1061
      %v1219 = vmul.f32 %v842, %v1066
      %v1220 = vmul.f32 %v848, %v1071
      %v1221 = vmul.f32 %v854, %v1076
      %v1222 = vmul.f32 %v860, %v1081
      %v1223 = vmul.f32 %v866, %v1086
      %v1224 = vmul.f32 %v872, %v1091
      %v1225 = vmul.f32 %v878, %v1096
      %v1226 = vmul.f32 %v884, %v1101
      %v1227 = vmul.f32 %v890, %v1106
      %v1228 = vmul.f32 %v896, %v1111
      %v1229 = vmul.f32 %v902, %v1116
      %v1230 = vmul.f32 %v908, %v1121
      %v1231 = vmul.f32 %v914, %v1126
      %v1232 = vmul.f32 %v920, %v1131
      %v1233 = vmul.f32 %v926, %v1136
      %v1234 = vmul.f32 %v932, %v1141
      %v1235 = vmul.f32 %v938, %v1146
      %v1236 = vmul.f32 %v944, %v1151
      %v1237 = vmul.f32 %v950, %v1156
      %v1238 = vmul.f32 %v956, %v1161
      %v1239 = vmul.f32 %v962, %v1166
      %v1240 = vmul.f32 %v968, %v1171
      %v1241 = vmul.f32 %v974, %v1176
      %v1242 = vmul.f32 %v980, %v1181
      %v1243 = vmul.f32 %v986, %v1186
      %v1244 = vmul.f32 %v992, %v1191
      %v1245 = vmul.f32 %v998, %v1196
      %v1246 = vmul.f32 %v1004, %v1201
      %v1247 = vmul.f32 %v1010, %v1206
      %v1248 = vmul.f32 %v1016, %v1211
      %v1249 = vmul.f32 %v1022, %v1216
      %v1250 = vld [vmem:[%s4] sm:$0xff]
      %v1251 = vld [vmem:[%s4 + $0x8] sm:$0xff]
      %v1252 = vld [vmem:[%s4 + $0x10] sm:$0xff]
      %v1253 = vld [vmem:[%s4 + $0x18] sm:$0xff]
      %v1254 = vld [vmem:[%s4 + $0x20] sm:$0xff]
      %v1255 = vld [vmem:[%s4 + $0x28] sm:$0xff]
      %v1256 = vld [vmem:[%s4 + $0x30] sm:$0xff]
      %v1257 = vld [vmem:[%s4 + $0x38] sm:$0xff]
      %v1258 = vld [vmem:[%s4 + $0x40] sm:$0xff]
      %v1259 = vld [vmem:[%s4 + $0x48] sm:$0xff]
      %v1260 = vld [vmem:[%s4 + $0x50] sm:$0xff]
      %v1261 = vld [vmem:[%s4 + $0x58] sm:$0xff]
      %v1262 = vld [vmem:[%s4 + $0x60] sm:$0xff]
      %v1263 = vld [vmem:[%s4 + $0x68] sm:$0xff]
      %v1264 = vld [vmem:[%s4 + $0x70] sm:$0xff]
      %v1265 = vld [vmem:[%s4 + $0x78] sm:$0xff]
      %v1266 = vld [vmem:[%s4 + $0x80] sm:$0xff]
      %v1267 = vld [vmem:[%s4 + $0x88] sm:$0xff]
      %v1268 = vld [vmem:[%s4 + $0x90] sm:$0xff]
      %v1269 = vld [vmem:[%s4 + $0x98] sm:$0xff]
      %v1270 = vld [vmem:[%s4 + $0xa0] sm:$0xff]
      %v1271 = vld [vmem:[%s4 + $0xa8] sm:$0xff]
      %v1272 = vld [vmem:[%s4 + $0xb0] sm:$0xff]
      %v1273 = vld [vmem:[%s4 + $0xb8] sm:$0xff]
      %v1274 = vld [vmem:[%s4 + $0xc0] sm:$0xff]
      %v1275 = vld [vmem:[%s4 + $0xc8] sm:$0xff]
      %v1276 = vld [vmem:[%s4 + $0xd0] sm:$0xff]
      %v1277 = vld [vmem:[%s4 + $0xd8] sm:$0xff]
      %v1278 = vld [vmem:[%s4 + $0xe0] sm:$0xff]
      %v1279 = vld [vmem:[%s4 + $0xe8] sm:$0xff]
      %v1280 = vld [vmem:[%s4 + $0xf0] sm:$0xff]
      %v1281 = vld [vmem:[%s4 + $0xf8] sm:$0xff]
      %1283 = vset.pattern.permute.xlu0 0
      %1284 = vperm.xlu0 %1283, %v1250
      %v1285 = vpop.permute.xlu0 %1284
      %1288 = vset.pattern.permute.xlu0 0
      %1289 = vperm.xlu0 %1288, %v1251
      %v1290 = vpop.permute.xlu0 %1289
      %1293 = vset.pattern.permute.xlu0 0
      %1294 = vperm.xlu0 %1293, %v1252
      %v1295 = vpop.permute.xlu0 %1294
      %1298 = vset.pattern.permute.xlu0 0
      %1299 = vperm.xlu0 %1298, %v1253
      %v1300 = vpop.permute.xlu0 %1299
      %1303 = vset.pattern.permute.xlu0 0
      %1304 = vperm.xlu0 %1303, %v1254
      %v1305 = vpop.permute.xlu0 %1304
      %1308 = vset.pattern.permute.xlu0 0
      %1309 = vperm.xlu0 %1308, %v1255
      %v1310 = vpop.permute.xlu0 %1309
      %1313 = vset.pattern.permute.xlu0 0
      %1314 = vperm.xlu0 %1313, %v1256
      %v1315 = vpop.permute.xlu0 %1314
      %1318 = vset.pattern.permute.xlu0 0
      %1319 = vperm.xlu0 %1318, %v1257
      %v1320 = vpop.permute.xlu0 %1319
      %1323 = vset.pattern.permute.xlu0 0
      %1324 = vperm.xlu0 %1323, %v1258
      %v1325 = vpop.permute.xlu0 %1324
      %1328 = vset.pattern.permute.xlu0 0
      %1329 = vperm.xlu0 %1328, %v1259
      %v1330 = vpop.permute.xlu0 %1329
      %1333 = vset.pattern.permute.xlu0 0
      %1334 = vperm.xlu0 %1333, %v1260
      %v1335 = vpop.permute.xlu0 %1334
      %1338 = vset.pattern.permute.xlu0 0
      %1339 = vperm.xlu0 %1338, %v1261
      %v1340 = vpop.permute.xlu0 %1339
      %1343 = vset.pattern.permute.xlu0 0
      %1344 = vperm.xlu0 %1343, %v1262
      %v1345 = vpop.permute.xlu0 %1344
      %1348 = vset.pattern.permute.xlu0 0
      %1349 = vperm.xlu0 %1348, %v1263
      %v1350 = vpop.permute.xlu0 %1349
      %1353 = vset.pattern.permute.xlu0 0
      %1354 = vperm.xlu0 %1353, %v1264
      %v1355 = vpop.permute.xlu0 %1354
      %1358 = vset.pattern.permute.xlu0 0
      %1359 = vperm.xlu0 %1358, %v1265
      %v1360 = vpop.permute.xlu0 %1359
      %1363 = vset.pattern.permute.xlu0 0
      %1364 = vperm.xlu0 %1363, %v1266
      %v1365 = vpop.permute.xlu0 %1364
      %1368 = vset.pattern.permute.xlu0 0
      %1369 = vperm.xlu0 %1368, %v1267
      %v1370 = vpop.permute.xlu0 %1369
      %1373 = vset.pattern.permute.xlu0 0
      %1374 = vperm.xlu0 %1373, %v1268
      %v1375 = vpop.permute.xlu0 %1374
      %1378 = vset.pattern.permute.xlu0 0
      %1379 = vperm.xlu0 %1378, %v1269
      %v1380 = vpop.permute.xlu0 %1379
      %1383 = vset.pattern.permute.xlu0 0
      %1384 = vperm.xlu0 %1383, %v1270
      %v1385 = vpop.permute.xlu0 %1384
      %1388 = vset.pattern.permute.xlu0 0
      %1389 = vperm.xlu0 %1388, %v1271
      %v1390 = vpop.permute.xlu0 %1389
      %1393 = vset.pattern.permute.xlu0 0
      %1394 = vperm.xlu0 %1393, %v1272
      %v1395 = vpop.permute.xlu0 %1394
      %1398 = vset.pattern.permute.xlu0 0
      %1399 = vperm.xlu0 %1398, %v1273
      %v1400 = vpop.permute.xlu0 %1399
      %1403 = vset.pattern.permute.xlu0 0
      %1404 = vperm.xlu0 %1403, %v1274
      %v1405 = vpop.permute.xlu0 %1404
      %1408 = vset.pattern.permute.xlu0 0
      %1409 = vperm.xlu0 %1408, %v1275
      %v1410 = vpop.permute.xlu0 %1409
      %1413 = vset.pattern.permute.xlu0 0
      %1414 = vperm.xlu0 %1413, %v1276
      %v1415 = vpop.permute.xlu0 %1414
      %1418 = vset.pattern.permute.xlu0 0
      %1419 = vperm.xlu0 %1418, %v1277
      %v1420 = vpop.permute.xlu0 %1419
      %1423 = vset.pattern.permute.xlu0 0
      %1424 = vperm.xlu0 %1423, %v1278
      %v1425 = vpop.permute.xlu0 %1424
      %1428 = vset.pattern.permute.xlu0 0
      %1429 = vperm.xlu0 %1428, %v1279
      %v1430 = vpop.permute.xlu0 %1429
      %1433 = vset.pattern.permute.xlu0 0
      %1434 = vperm.xlu0 %1433, %v1280
      %v1435 = vpop.permute.xlu0 %1434
      %1438 = vset.pattern.permute.xlu0 0
      %1439 = vperm.xlu0 %1438, %v1281
      %v1440 = vpop.permute.xlu0 %1439
      %v1442 = vmul.f32 %v838, %v1285
      %v1443 = vmul.f32 %v844, %v1290
      %v1444 = vmul.f32 %v850, %v1295
      %v1445 = vmul.f32 %v856, %v1300
      %v1446 = vmul.f32 %v862, %v1305
      %v1447 = vmul.f32 %v868, %v1310
      %v1448 = vmul.f32 %v874, %v1315
      %v1449 = vmul.f32 %v880, %v1320
      %v1450 = vmul.f32 %v886, %v1325
      %v1451 = vmul.f32 %v892, %v1330
      %v1452 = vmul.f32 %v898, %v1335
      %v1453 = vmul.f32 %v904, %v1340
      %v1454 = vmul.f32 %v910, %v1345
      %v1455 = vmul.f32 %v916, %v1350
      %v1456 = vmul.f32 %v922, %v1355
      %v1457 = vmul.f32 %v928, %v1360
      %v1458 = vmul.f32 %v934, %v1365
      %v1459 = vmul.f32 %v940, %v1370
      %v1460 = vmul.f32 %v946, %v1375
      %v1461 = vmul.f32 %v952, %v1380
      %v1462 = vmul.f32 %v958, %v1385
      %v1463 = vmul.f32 %v964, %v1390
      %v1464 = vmul.f32 %v970, %v1395
      %v1465 = vmul.f32 %v976, %v1400
      %v1466 = vmul.f32 %v982, %v1405
      %v1467 = vmul.f32 %v988, %v1410
      %v1468 = vmul.f32 %v994, %v1415
      %v1469 = vmul.f32 %v1000, %v1420
      %v1470 = vmul.f32 %v1006, %v1425
      %v1471 = vmul.f32 %v1012, %v1430
      %v1472 = vmul.f32 %v1018, %v1435
      %v1473 = vmul.f32 %v1024, %v1440
      %v1474 = vld [vmem:[%s610] sm:$0xff]
      %v1475 = vld [vmem:[%s610 + $0x8] sm:$0xff]
      %v1476 = vld [vmem:[%s610 + $0x10] sm:$0xff]
      %v1477 = vld [vmem:[%s610 + $0x18] sm:$0xff]
      %v1478 = vld [vmem:[%s610 + $0x20] sm:$0xff]
      %v1479 = vld [vmem:[%s610 + $0x28] sm:$0xff]
      %v1480 = vld [vmem:[%s610 + $0x30] sm:$0xff]
      %v1481 = vld [vmem:[%s610 + $0x38] sm:$0xff]
      %v1482 = vld [vmem:[%s610 + $0x40] sm:$0xff]
      %v1483 = vld [vmem:[%s610 + $0x48] sm:$0xff]
      %v1484 = vld [vmem:[%s610 + $0x50] sm:$0xff]
      %v1485 = vld [vmem:[%s610 + $0x58] sm:$0xff]
      %v1486 = vld [vmem:[%s610 + $0x60] sm:$0xff]
      %v1487 = vld [vmem:[%s610 + $0x68] sm:$0xff]
      %v1488 = vld [vmem:[%s610 + $0x70] sm:$0xff]
      %v1489 = vld [vmem:[%s610 + $0x78] sm:$0xff]
      %v1490 = vld [vmem:[%s597] sm:$0xff]
      %v1491 = vld [vmem:[%s597 + $0x8] sm:$0xff]
      %v1492 = vld [vmem:[%s597 + $0x10] sm:$0xff]
      %v1493 = vld [vmem:[%s597 + $0x18] sm:$0xff]
      %v1494 = vld [vmem:[%s597 + $0x20] sm:$0xff]
      %v1495 = vld [vmem:[%s597 + $0x28] sm:$0xff]
      %v1496 = vld [vmem:[%s597 + $0x30] sm:$0xff]
      %v1497 = vld [vmem:[%s597 + $0x38] sm:$0xff]
      %v1498 = vld [vmem:[%s597 + $0x40] sm:$0xff]
      %v1499 = vld [vmem:[%s597 + $0x48] sm:$0xff]
      %v1500 = vld [vmem:[%s597 + $0x50] sm:$0xff]
      %v1501 = vld [vmem:[%s597 + $0x58] sm:$0xff]
      %v1502 = vld [vmem:[%s597 + $0x60] sm:$0xff]
      %v1503 = vld [vmem:[%s597 + $0x68] sm:$0xff]
      %v1504 = vld [vmem:[%s597 + $0x70] sm:$0xff]
      %v1505 = vld [vmem:[%s597 + $0x78] sm:$0xff]
      %v1506 = vld [vmem:[%s597 + $0x80] sm:$0xff]
      %v1507 = vld [vmem:[%s597 + $0x88] sm:$0xff]
      %v1508 = vld [vmem:[%s597 + $0x90] sm:$0xff]
      %v1509 = vld [vmem:[%s597 + $0x98] sm:$0xff]
      %v1510 = vld [vmem:[%s597 + $0xa0] sm:$0xff]
      %v1511 = vld [vmem:[%s597 + $0xa8] sm:$0xff]
      %v1512 = vld [vmem:[%s597 + $0xb0] sm:$0xff]
      %v1513 = vld [vmem:[%s597 + $0xb8] sm:$0xff]
      %v1514 = vld [vmem:[%s597 + $0xc0] sm:$0xff]
      %v1515 = vld [vmem:[%s597 + $0xc8] sm:$0xff]
      %v1516 = vld [vmem:[%s597 + $0xd0] sm:$0xff]
      %v1517 = vld [vmem:[%s597 + $0xd8] sm:$0xff]
      %v1518 = vld [vmem:[%s597 + $0xe0] sm:$0xff]
      %v1519 = vld [vmem:[%s597 + $0xe8] sm:$0xff]
      %v1520 = vld [vmem:[%s597 + $0xf0] sm:$0xff]
      %v1521 = vld [vmem:[%s597 + $0xf8] sm:$0xff]
      %1522 = vmatprep.subr.mxu0 0.0
      %1523 = vmatpush1.msra.mxu0 %v1218
      %1524 = vmatprep.subr.mxu0 0.0
      %1525 = vmatpush1.msra.mxu0 %v1219
      %1526 = vmatprep.subr.mxu0 0.0
      %1527 = vmatpush1.msra.mxu0 %v1220
      %1528 = vmatprep.subr.mxu0 0.0
      %1529 = vmatpush1.msra.mxu0 %v1221
      %1530 = vmatprep.subr.mxu0 0.0
      %1531 = vmatpush1.msra.mxu0 %v1222
      %1532 = vmatprep.subr.mxu0 0.0
      %1533 = vmatpush1.msra.mxu0 %v1223
      %1534 = vmatprep.subr.mxu0 0.0
      %1535 = vmatpush1.msra.mxu0 %v1224
      %1536 = vmatprep.subr.mxu0 0.0
      %1537 = vmatpush1.msra.mxu0 %v1225
      %1538 = vmatprep.subr.mxu0 0.0
      %1539 = vmatpush1.msra.mxu0 %v1226
      %1540 = vmatprep.subr.mxu0 0.0
      %1541 = vmatpush1.msra.mxu0 %v1227
      %1542 = vmatprep.subr.mxu0 0.0
      %1543 = vmatpush1.msra.mxu0 %v1228
      %1544 = vmatprep.subr.mxu0 0.0
      %1545 = vmatpush1.msra.mxu0 %v1229
      %1546 = vmatprep.subr.mxu0 0.0
      %1547 = vmatpush1.msra.mxu0 %v1230
      %1548 = vmatprep.subr.mxu0 0.0
      %1549 = vmatpush1.msra.mxu0 %v1231
      %1550 = vmatprep.subr.mxu0 0.0
      %1551 = vmatpush1.msra.mxu0 %v1232
      %1552 = vmatprep.subr.mxu0 0.0
      %1553 = vmatpush1.msra.mxu0 %v1233
      %1554 = vmatprep.subr.mxu0 0.0
      %1555 = vmatpush1.msra.mxu0 %v1234
      %1556 = vmatprep.subr.mxu0 0.0
      %1557 = vmatpush1.msra.mxu0 %v1235
      %1558 = vmatprep.subr.mxu0 0.0
      %1559 = vmatpush1.msra.mxu0 %v1236
      %1560 = vmatprep.subr.mxu0 0.0
      %1561 = vmatpush1.msra.mxu0 %v1237
      %1562 = vmatprep.subr.mxu0 0.0
      %1563 = vmatpush1.msra.mxu0 %v1238
      %1564 = vmatprep.subr.mxu0 0.0
      %1565 = vmatpush1.msra.mxu0 %v1239
      %1566 = vmatprep.subr.mxu0 0.0
      %1567 = vmatpush1.msra.mxu0 %v1240
      %1568 = vmatprep.subr.mxu0 0.0
      %1569 = vmatpush1.msra.mxu0 %v1241
      %1570 = vmatprep.subr.mxu0 0.0
      %1571 = vmatpush1.msra.mxu0 %v1242
      %1572 = vmatprep.subr.mxu0 0.0
      %1573 = vmatpush1.msra.mxu0 %v1243
      %1574 = vmatprep.subr.mxu0 0.0
      %1575 = vmatpush1.msra.mxu0 %v1244
      %1576 = vmatprep.subr.mxu0 0.0
      %1577 = vmatpush1.msra.mxu0 %v1245
      %1578 = vmatprep.subr.mxu0 0.0
      %1579 = vmatpush1.msra.mxu0 %v1246
      %1580 = vmatprep.subr.mxu0 0.0
      %1581 = vmatpush1.msra.mxu0 %v1247
      %1582 = vmatprep.subr.mxu0 0.0
      %1583 = vmatpush1.msra.mxu0 %v1248
      %1584 = vmatprep.subr.mxu0 0.0
      %1585 = vmatpush1.msra.mxu0 %v1249
      %1586 = vmatprep.mubr.f32.mxu0 %v1491
      %1587 = vmatmul.mubr.f32.gmra.mrb[0].mxu0 %v1490
      %v1588 = vpop.f32.mrb[0].mxu0
      %v1589 = vadd.f32 0.0, %v1588
      %v1590 = vpop.f32.mrb[0].mxu0
      %1591 = vmatprep.mubr.f32.mxu0 %v1493
      %1592 = vmatmul.mubr.f32.gmra.mrb[0].mxu0 %v1492
      %v1593 = vpop.f32.mrb[0].mxu0
      %v1594 = vadd.f32 0.0, %v1593
      %v1595 = vpop.f32.mrb[0].mxu0
      %1596 = vmatprep.mubr.f32.mxu0 %v1495
      %1597 = vmatmul.mubr.f32.gmra.mrb[0].mxu0 %v1494
      %v1598 = vpop.f32.mrb[0].mxu0
      %v1599 = vadd.f32 0.0, %v1598
      %v1600 = vpop.f32.mrb[0].mxu0
      %1601 = vmatprep.mubr.f32.mxu0 %v1497
      %1602 = vmatmul.mubr.f32.gmra.mrb[0].mxu0 %v1496
      %v1603 = vpop.f32.mrb[0].mxu0
      %v1604 = vadd.f32 0.0, %v1603
      %v1605 = vpop.f32.mrb[0].mxu0
      %1606 = vmatprep.mubr.f32.mxu0 %v1499
      %1607 = vmatmul.mubr.f32.gmra.mrb[0].mxu0 %v1498
      %v1608 = vpop.f32.mrb[0].mxu0
      %v1609 = vadd.f32 0.0, %v1608
      %v1610 = vpop.f32.mrb[0].mxu0
      %1611 = vmatprep.mubr.f32.mxu0 %v1501
      %1612 = vmatmul.mubr.f32.gmra.mrb[0].mxu0 %v1500
      %v1613 = vpop.f32.mrb[0].mxu0
      %v1614 = vadd.f32 0.0, %v1613
      %v1615 = vpop.f32.mrb[0].mxu0
      %1616 = vmatprep.mubr.f32.mxu0 %v1503
      %1617 = vmatmul.mubr.f32.gmra.mrb[0].mxu0 %v1502
      %v1618 = vpop.f32.mrb[0].mxu0
      %v1619 = vadd.f32 0.0, %v1618
      %v1620 = vpop.f32.mrb[0].mxu0
      %1621 = vmatprep.mubr.f32.mxu0 %v1505
      %1622 = vmatmul.mubr.f32.gmra.mrb[0].mxu0 %v1504
      %v1623 = vpop.f32.mrb[0].mxu0
      %v1624 = vadd.f32 0.0, %v1623
      %v1625 = vpop.f32.mrb[0].mxu0
      %1626 = vmatprep.mubr.f32.mxu0 %v1507
      %1627 = vmatmul.mubr.f32.gmra.mrb[0].mxu0 %v1506
      %v1628 = vpop.f32.mrb[0].mxu0
      %v1629 = vadd.f32 0.0, %v1628
      %v1630 = vpop.f32.mrb[0].mxu0
      %1631 = vmatprep.mubr.f32.mxu0 %v1509
      %1632 = vmatmul.mubr.f32.gmra.mrb[0].mxu0 %v1508
      %v1633 = vpop.f32.mrb[0].mxu0
      %v1634 = vadd.f32 0.0, %v1633
      %v1635 = vpop.f32.mrb[0].mxu0
      %1636 = vmatprep.mubr.f32.mxu0 %v1511
      %1637 = vmatmul.mubr.f32.gmra.mrb[0].mxu0 %v1510
      %v1638 = vpop.f32.mrb[0].mxu0
      %v1639 = vadd.f32 0.0, %v1638
      %v1640 = vpop.f32.mrb[0].mxu0
      %1641 = vmatprep.mubr.f32.mxu0 %v1513
      %1642 = vmatmul.mubr.f32.gmra.mrb[0].mxu0 %v1512
      %v1643 = vpop.f32.mrb[0].mxu0
      %v1644 = vadd.f32 0.0, %v1643
      %v1645 = vpop.f32.mrb[0].mxu0
      %1646 = vmatprep.mubr.f32.mxu0 %v1515
      %1647 = vmatmul.mubr.f32.gmra.mrb[0].mxu0 %v1514
      %v1648 = vpop.f32.mrb[0].mxu0
      %v1649 = vadd.f32 0.0, %v1648
      %v1650 = vpop.f32.mrb[0].mxu0
      %1651 = vmatprep.mubr.f32.mxu0 %v1517
      %1652 = vmatmul.mubr.f32.gmra.mrb[0].mxu0 %v1516
      %v1653 = vpop.f32.mrb[0].mxu0
      %v1654 = vadd.f32 0.0, %v1653
      %v1655 = vpop.f32.mrb[0].mxu0
      %1656 = vmatprep.mubr.f32.mxu0 %v1519
      %1657 = vmatmul.mubr.f32.gmra.mrb[0].mxu0 %v1518
      %v1658 = vpop.f32.mrb[0].mxu0
      %v1659 = vadd.f32 0.0, %v1658
      %v1660 = vpop.f32.mrb[0].mxu0
      %1661 = vmatprep.mubr.f32.mxu0 %v1521
      %1662 = vmatmul.mubr.f32.gmra.mrb[0].mxu0 %v1520
      %v1663 = vpop.f32.mrb[0].mxu0
      %v1664 = vadd.f32 0.0, %v1663
      %v1665 = vpop.f32.mrb[0].mxu0
      %1666 = vdwg.mxu0
      %1668 = vset.pattern.permute.xlu0 0
      %1669 = vperm.xlu0 %1668, %v1474
      %v1670 = vpop.permute.xlu0 %1669
      %1673 = vset.pattern.permute.xlu0 0
      %1674 = vperm.xlu0 %1673, %v1475
      %v1675 = vpop.permute.xlu0 %1674
      %1678 = vset.pattern.permute.xlu0 0
      %1679 = vperm.xlu0 %1678, %v1476
      %v1680 = vpop.permute.xlu0 %1679
      %1683 = vset.pattern.permute.xlu0 0
      %1684 = vperm.xlu0 %1683, %v1477
      %v1685 = vpop.permute.xlu0 %1684
      %1688 = vset.pattern.permute.xlu0 0
      %1689 = vperm.xlu0 %1688, %v1478
      %v1690 = vpop.permute.xlu0 %1689
      %1693 = vset.pattern.permute.xlu0 0
      %1694 = vperm.xlu0 %1693, %v1479
      %v1695 = vpop.permute.xlu0 %1694
      %1698 = vset.pattern.permute.xlu0 0
      %1699 = vperm.xlu0 %1698, %v1480
      %v1700 = vpop.permute.xlu0 %1699
      %1703 = vset.pattern.permute.xlu0 0
      %1704 = vperm.xlu0 %1703, %v1481
      %v1705 = vpop.permute.xlu0 %1704
      %1708 = vset.pattern.permute.xlu0 0
      %1709 = vperm.xlu0 %1708, %v1482
      %v1710 = vpop.permute.xlu0 %1709
      %1713 = vset.pattern.permute.xlu0 0
      %1714 = vperm.xlu0 %1713, %v1483
      %v1715 = vpop.permute.xlu0 %1714
      %1718 = vset.pattern.permute.xlu0 0
      %1719 = vperm.xlu0 %1718, %v1484
      %v1720 = vpop.permute.xlu0 %1719
      %1723 = vset.pattern.permute.xlu0 0
      %1724 = vperm.xlu0 %1723, %v1485
      %v1725 = vpop.permute.xlu0 %1724
      %1728 = vset.pattern.permute.xlu0 0
      %1729 = vperm.xlu0 %1728, %v1486
      %v1730 = vpop.permute.xlu0 %1729
      %1733 = vset.pattern.permute.xlu0 0
      %1734 = vperm.xlu0 %1733, %v1487
      %v1735 = vpop.permute.xlu0 %1734
      %1738 = vset.pattern.permute.xlu0 0
      %1739 = vperm.xlu0 %1738, %v1488
      %v1740 = vpop.permute.xlu0 %1739
      %1743 = vset.pattern.permute.xlu0 0
      %1744 = vperm.xlu0 %1743, %v1489
      %v1745 = vpop.permute.xlu0 %1744
      %v1747 = vmul.f32 %v1670, %v1589
      %v1748 = vmul.f32 %v1675, %v1594
      %v1749 = vmul.f32 %v1680, %v1599
      %v1750 = vmul.f32 %v1685, %v1604
      %v1751 = vmul.f32 %v1690, %v1609
      %v1752 = vmul.f32 %v1695, %v1614
      %v1753 = vmul.f32 %v1700, %v1619
      %v1754 = vmul.f32 %v1705, %v1624
      %v1755 = vmul.f32 %v1710, %v1629
      %v1756 = vmul.f32 %v1715, %v1634
      %v1757 = vmul.f32 %v1720, %v1639
      %v1758 = vmul.f32 %v1725, %v1644
      %v1759 = vmul.f32 %v1730, %v1649
      %v1760 = vmul.f32 %v1735, %v1654
      %v1761 = vmul.f32 %v1740, %v1659
      %v1762 = vmul.f32 %v1745, %v1664
      %v1763 = vld [vmem:[%s8] sm:$0x1]
      %v1765 = vlaneseq
      %v1766 = vshrl.u32 %v1765, 7
      %v1767 = vsub.s32 0, %v1766
      %v1768 = vrot.slane %v1763, %v1767
      %v1770 = vadd.f32 %v1747, %v1768
      %v1771 = vadd.f32 %v1748, %v1768
      %v1772 = vadd.f32 %v1749, %v1768
      %v1773 = vadd.f32 %v1750, %v1768
      %v1774 = vadd.f32 %v1751, %v1768
      %v1775 = vadd.f32 %v1752, %v1768
      %v1776 = vadd.f32 %v1753, %v1768
      %v1777 = vadd.f32 %v1754, %v1768
      %v1778 = vadd.f32 %v1755, %v1768
      %v1779 = vadd.f32 %v1756, %v1768
      %v1780 = vadd.f32 %v1757, %v1768
      %v1781 = vadd.f32 %v1758, %v1768
      %v1782 = vadd.f32 %v1759, %v1768
      %v1783 = vadd.f32 %v1760, %v1768
      %v1784 = vadd.f32 %v1761, %v1768
      %v1785 = vadd.f32 %v1762, %v1768
      %v1786 = vld [vmem:[%s616] sm:$0xff]
      %v1787 = vld [vmem:[%s616 + $0x8] sm:$0xff]
      %v1788 = vld [vmem:[%s616 + $0x10] sm:$0xff]
      %v1789 = vld [vmem:[%s616 + $0x18] sm:$0xff]
      %v1790 = vld [vmem:[%s616 + $0x20] sm:$0xff]
      %v1791 = vld [vmem:[%s616 + $0x28] sm:$0xff]
      %v1792 = vld [vmem:[%s616 + $0x30] sm:$0xff]
      %v1793 = vld [vmem:[%s616 + $0x38] sm:$0xff]
      %v1794 = vld [vmem:[%s616 + $0x40] sm:$0xff]
      %v1795 = vld [vmem:[%s616 + $0x48] sm:$0xff]
      %v1796 = vld [vmem:[%s616 + $0x50] sm:$0xff]
      %v1797 = vld [vmem:[%s616 + $0x58] sm:$0xff]
      %v1798 = vld [vmem:[%s616 + $0x60] sm:$0xff]
      %v1799 = vld [vmem:[%s616 + $0x68] sm:$0xff]
      %v1800 = vld [vmem:[%s616 + $0x70] sm:$0xff]
      %v1801 = vld [vmem:[%s616 + $0x78] sm:$0xff]
      %v1802 = vld [vmem:[%s604] sm:$0xff]
      %v1803 = vld [vmem:[%s604 + $0x8] sm:$0xff]
      %v1804 = vld [vmem:[%s604 + $0x10] sm:$0xff]
      %v1805 = vld [vmem:[%s604 + $0x18] sm:$0xff]
      %v1806 = vld [vmem:[%s604 + $0x20] sm:$0xff]
      %v1807 = vld [vmem:[%s604 + $0x28] sm:$0xff]
      %v1808 = vld [vmem:[%s604 + $0x30] sm:$0xff]
      %v1809 = vld [vmem:[%s604 + $0x38] sm:$0xff]
      %v1810 = vld [vmem:[%s604 + $0x40] sm:$0xff]
      %v1811 = vld [vmem:[%s604 + $0x48] sm:$0xff]
      %v1812 = vld [vmem:[%s604 + $0x50] sm:$0xff]
      %v1813 = vld [vmem:[%s604 + $0x58] sm:$0xff]
      %v1814 = vld [vmem:[%s604 + $0x60] sm:$0xff]
      %v1815 = vld [vmem:[%s604 + $0x68] sm:$0xff]
      %v1816 = vld [vmem:[%s604 + $0x70] sm:$0xff]
      %v1817 = vld [vmem:[%s604 + $0x78] sm:$0xff]
      %v1818 = vld [vmem:[%s604 + $0x80] sm:$0xff]
      %v1819 = vld [vmem:[%s604 + $0x88] sm:$0xff]
      %v1820 = vld [vmem:[%s604 + $0x90] sm:$0xff]
      %v1821 = vld [vmem:[%s604 + $0x98] sm:$0xff]
      %v1822 = vld [vmem:[%s604 + $0xa0] sm:$0xff]
      %v1823 = vld [vmem:[%s604 + $0xa8] sm:$0xff]
      %v1824 = vld [vmem:[%s604 + $0xb0] sm:$0xff]
      %v1825 = vld [vmem:[%s604 + $0xb8] sm:$0xff]
      %v1826 = vld [vmem:[%s604 + $0xc0] sm:$0xff]
      %v1827 = vld [vmem:[%s604 + $0xc8] sm:$0xff]
      %v1828 = vld [vmem:[%s604 + $0xd0] sm:$0xff]
      %v1829 = vld [vmem:[%s604 + $0xd8] sm:$0xff]
      %v1830 = vld [vmem:[%s604 + $0xe0] sm:$0xff]
      %v1831 = vld [vmem:[%s604 + $0xe8] sm:$0xff]
      %v1832 = vld [vmem:[%s604 + $0xf0] sm:$0xff]
      %v1833 = vld [vmem:[%s604 + $0xf8] sm:$0xff]
      %1834 = vmatprep.subr.mxu0 0.0
      %1835 = vmatpush1.msra.mxu0 %v1442
      %1836 = vmatprep.subr.mxu0 0.0
      %1837 = vmatpush1.msra.mxu0 %v1443
      %1838 = vmatprep.subr.mxu0 0.0
      %1839 = vmatpush1.msra.mxu0 %v1444
      %1840 = vmatprep.subr.mxu0 0.0
      %1841 = vmatpush1.msra.mxu0 %v1445
      %1842 = vmatprep.subr.mxu0 0.0
      %1843 = vmatpush1.msra.mxu0 %v1446
      %1844 = vmatprep.subr.mxu0 0.0
      %1845 = vmatpush1.msra.mxu0 %v1447
      %1846 = vmatprep.subr.mxu0 0.0
      %1847 = vmatpush1.msra.mxu0 %v1448
      %1848 = vmatprep.subr.mxu0 0.0
      %1849 = vmatpush1.msra.mxu0 %v1449
      %1850 = vmatprep.subr.mxu0 0.0
      %1851 = vmatpush1.msra.mxu0 %v1450
      %1852 = vmatprep.subr.mxu0 0.0
      %1853 = vmatpush1.msra.mxu0 %v1451
      %1854 = vmatprep.subr.mxu0 0.0
      %1855 = vmatpush1.msra.mxu0 %v1452
      %1856 = vmatprep.subr.mxu0 0.0
      %1857 = vmatpush1.msra.mxu0 %v1453
      %1858 = vmatprep.subr.mxu0 0.0
      %1859 = vmatpush1.msra.mxu0 %v1454
      %1860 = vmatprep.subr.mxu0 0.0
      %1861 = vmatpush1.msra.mxu0 %v1455
      %1862 = vmatprep.subr.mxu0 0.0
      %1863 = vmatpush1.msra.mxu0 %v1456
      %1864 = vmatprep.subr.mxu0 0.0
      %1865 = vmatpush1.msra.mxu0 %v1457
      %1866 = vmatprep.subr.mxu0 0.0
      %1867 = vmatpush1.msra.mxu0 %v1458
      %1868 = vmatprep.subr.mxu0 0.0
      %1869 = vmatpush1.msra.mxu0 %v1459
      %1870 = vmatprep.subr.mxu0 0.0
      %1871 = vmatpush1.msra.mxu0 %v1460
      %1872 = vmatprep.subr.mxu0 0.0
      %1873 = vmatpush1.msra.mxu0 %v1461
      %1874 = vmatprep.subr.mxu0 0.0
      %1875 = vmatpush1.msra.mxu0 %v1462
      %1876 = vmatprep.subr.mxu0 0.0
      %1877 = vmatpush1.msra.mxu0 %v1463
      %1878 = vmatprep.subr.mxu0 0.0
      %1879 = vmatpush1.msra.mxu0 %v1464
      %1880 = vmatprep.subr.mxu0 0.0
      %1881 = vmatpush1.msra.mxu0 %v1465
      %1882 = vmatprep.subr.mxu0 0.0
      %1883 = vmatpush1.msra.mxu0 %v1466
      %1884 = vmatprep.subr.mxu0 0.0
      %1885 = vmatpush1.msra.mxu0 %v1467
      %1886 = vmatprep.subr.mxu0 0.0
      %1887 = vmatpush1.msra.mxu0 %v1468
      %1888 = vmatprep.subr.mxu0 0.0
      %1889 = vmatpush1.msra.mxu0 %v1469
      %1890 = vmatprep.subr.mxu0 0.0
      %1891 = vmatpush1.msra.mxu0 %v1470
      %1892 = vmatprep.subr.mxu0 0.0
      %1893 = vmatpush1.msra.mxu0 %v1471
      %1894 = vmatprep.subr.mxu0 0.0
      %1895 = vmatpush1.msra.mxu0 %v1472
      %1896 = vmatprep.subr.mxu0 0.0
      %1897 = vmatpush1.msra.mxu0 %v1473
      %1898 = vmatprep.mubr.f32.mxu0 %v1803
      %1899 = vmatmul.mubr.f32.gmra.mrb[0].mxu0 %v1802
      %v1900 = vpop.f32.mrb[0].mxu0
      %v1901 = vadd.f32 0.0, %v1900
      %v1902 = vpop.f32.mrb[0].mxu0
      %1903 = vmatprep.mubr.f32.mxu0 %v1805
      %1904 = vmatmul.mubr.f32.gmra.mrb[0].mxu0 %v1804
      %v1905 = vpop.f32.mrb[0].mxu0
      %v1906 = vadd.f32 0.0, %v1905
      %v1907 = vpop.f32.mrb[0].mxu0
      %1908 = vmatprep.mubr.f32.mxu0 %v1807
      %1909 = vmatmul.mubr.f32.gmra.mrb[0].mxu0 %v1806
      %v1910 = vpop.f32.mrb[0].mxu0
      %v1911 = vadd.f32 0.0, %v1910
      %v1912 = vpop.f32.mrb[0].mxu0
      %1913 = vmatprep.mubr.f32.mxu0 %v1809
      %1914 = vmatmul.mubr.f32.gmra.mrb[0].mxu0 %v1808
      %v1915 = vpop.f32.mrb[0].mxu0
      %v1916 = vadd.f32 0.0, %v1915
      %v1917 = vpop.f32.mrb[0].mxu0
      %1918 = vmatprep.mubr.f32.mxu0 %v1811
      %1919 = vmatmul.mubr.f32.gmra.mrb[0].mxu0 %v1810
      %v1920 = vpop.f32.mrb[0].mxu0
      %v1921 = vadd.f32 0.0, %v1920
      %v1922 = vpop.f32.mrb[0].mxu0
      %1923 = vmatprep.mubr.f32.mxu0 %v1813
      %1924 = vmatmul.mubr.f32.gmra.mrb[0].mxu0 %v1812
      %v1925 = vpop.f32.mrb[0].mxu0
      %v1926 = vadd.f32 0.0, %v1925
      %v1927 = vpop.f32.mrb[0].mxu0
      %1928 = vmatprep.mubr.f32.mxu0 %v1815
      %1929 = vmatmul.mubr.f32.gmra.mrb[0].mxu0 %v1814
      %v1930 = vpop.f32.mrb[0].mxu0
      %v1931 = vadd.f32 0.0, %v1930
      %v1932 = vpop.f32.mrb[0].mxu0
      %1933 = vmatprep.mubr.f32.mxu0 %v1817
      %1934 = vmatmul.mubr.f32.gmra.mrb[0].mxu0 %v1816
      %v1935 = vpop.f32.mrb[0].mxu0
      %v1936 = vadd.f32 0.0, %v1935
      %v1937 = vpop.f32.mrb[0].mxu0
      %1938 = vmatprep.mubr.f32.mxu0 %v1819
      %1939 = vmatmul.mubr.f32.gmra.mrb[0].mxu0 %v1818
      %v1940 = vpop.f32.mrb[0].mxu0
      %v1941 = vadd.f32 0.0, %v1940
      %v1942 = vpop.f32.mrb[0].mxu0
      %1943 = vmatprep.mubr.f32.mxu0 %v1821
      %1944 = vmatmul.mubr.f32.gmra.mrb[0].mxu0 %v1820
      %v1945 = vpop.f32.mrb[0].mxu0
      %v1946 = vadd.f32 0.0, %v1945
      %v1947 = vpop.f32.mrb[0].mxu0
      %1948 = vmatprep.mubr.f32.mxu0 %v1823
      %1949 = vmatmul.mubr.f32.gmra.mrb[0].mxu0 %v1822
      %v1950 = vpop.f32.mrb[0].mxu0
      %v1951 = vadd.f32 0.0, %v1950
      %v1952 = vpop.f32.mrb[0].mxu0
      %1953 = vmatprep.mubr.f32.mxu0 %v1825
      %1954 = vmatmul.mubr.f32.gmra.mrb[0].mxu0 %v1824
      %v1955 = vpop.f32.mrb[0].mxu0
      %v1956 = vadd.f32 0.0, %v1955
      %v1957 = vpop.f32.mrb[0].mxu0
      %1958 = vmatprep.mubr.f32.mxu0 %v1827
      %1959 = vmatmul.mubr.f32.gmra.mrb[0].mxu0 %v1826
      %v1960 = vpop.f32.mrb[0].mxu0
      %v1961 = vadd.f32 0.0, %v1960
      %v1962 = vpop.f32.mrb[0].mxu0
      %1963 = vmatprep.mubr.f32.mxu0 %v1829
      %1964 = vmatmul.mubr.f32.gmra.mrb[0].mxu0 %v1828
      %v1965 = vpop.f32.mrb[0].mxu0
      %v1966 = vadd.f32 0.0, %v1965
      %v1967 = vpop.f32.mrb[0].mxu0
      %1968 = vmatprep.mubr.f32.mxu0 %v1831
      %1969 = vmatmul.mubr.f32.gmra.mrb[0].mxu0 %v1830
      %v1970 = vpop.f32.mrb[0].mxu0
      %v1971 = vadd.f32 0.0, %v1970
      %v1972 = vpop.f32.mrb[0].mxu0
      %1973 = vmatprep.mubr.f32.mxu0 %v1833
      %1974 = vmatmul.mubr.f32.gmra.mrb[0].mxu0 %v1832
      %v1975 = vpop.f32.mrb[0].mxu0
      %v1976 = vadd.f32 0.0, %v1975
      %v1977 = vpop.f32.mrb[0].mxu0
      %1978 = vdwg.mxu0
      %1980 = vset.pattern.permute.xlu0 0
      %1981 = vperm.xlu0 %1980, %v1786
      %v1982 = vpop.permute.xlu0 %1981
      %1985 = vset.pattern.permute.xlu0 0
      %1986 = vperm.xlu0 %1985, %v1787
      %v1987 = vpop.permute.xlu0 %1986
      %1990 = vset.pattern.permute.xlu0 0
      %1991 = vperm.xlu0 %1990, %v1788
      %v1992 = vpop.permute.xlu0 %1991
      %1995 = vset.pattern.permute.xlu0 0
      %1996 = vperm.xlu0 %1995, %v1789
      %v1997 = vpop.permute.xlu0 %1996
      %2000 = vset.pattern.permute.xlu0 0
      %2001 = vperm.xlu0 %2000, %v1790
      %v2002 = vpop.permute.xlu0 %2001
      %2005 = vset.pattern.permute.xlu0 0
      %2006 = vperm.xlu0 %2005, %v1791
      %v2007 = vpop.permute.xlu0 %2006
      %2010 = vset.pattern.permute.xlu0 0
      %2011 = vperm.xlu0 %2010, %v1792
      %v2012 = vpop.permute.xlu0 %2011
      %2015 = vset.pattern.permute.xlu0 0
      %2016 = vperm.xlu0 %2015, %v1793
      %v2017 = vpop.permute.xlu0 %2016
      %2020 = vset.pattern.permute.xlu0 0
      %2021 = vperm.xlu0 %2020, %v1794
      %v2022 = vpop.permute.xlu0 %2021
      %2025 = vset.pattern.permute.xlu0 0
      %2026 = vperm.xlu0 %2025, %v1795
      %v2027 = vpop.permute.xlu0 %2026
      %2030 = vset.pattern.permute.xlu0 0
      %2031 = vperm.xlu0 %2030, %v1796
      %v2032 = vpop.permute.xlu0 %2031
      %2035 = vset.pattern.permute.xlu0 0
      %2036 = vperm.xlu0 %2035, %v1797
      %v2037 = vpop.permute.xlu0 %2036
      %2040 = vset.pattern.permute.xlu0 0
      %2041 = vperm.xlu0 %2040, %v1798
      %v2042 = vpop.permute.xlu0 %2041
      %2045 = vset.pattern.permute.xlu0 0
      %2046 = vperm.xlu0 %2045, %v1799
      %v2047 = vpop.permute.xlu0 %2046
      %2050 = vset.pattern.permute.xlu0 0
      %2051 = vperm.xlu0 %2050, %v1800
      %v2052 = vpop.permute.xlu0 %2051
      %2055 = vset.pattern.permute.xlu0 0
      %2056 = vperm.xlu0 %2055, %v1801
      %v2057 = vpop.permute.xlu0 %2056
      %v2059 = vmul.f32 %v1982, %v1901
      %v2060 = vmul.f32 %v1987, %v1906
      %v2061 = vmul.f32 %v1992, %v1911
      %v2062 = vmul.f32 %v1997, %v1916
      %v2063 = vmul.f32 %v2002, %v1921
      %v2064 = vmul.f32 %v2007, %v1926
      %v2065 = vmul.f32 %v2012, %v1931
      %v2066 = vmul.f32 %v2017, %v1936
      %v2067 = vmul.f32 %v2022, %v1941
      %v2068 = vmul.f32 %v2027, %v1946
      %v2069 = vmul.f32 %v2032, %v1951
      %v2070 = vmul.f32 %v2037, %v1956
      %v2071 = vmul.f32 %v2042, %v1961
      %v2072 = vmul.f32 %v2047, %v1966
      %v2073 = vmul.f32 %v2052, %v1971
      %v2074 = vmul.f32 %v2057, %v1976
      %v2075 = vld [vmem:[%s9] sm:$0x1]
      %v2077 = vlaneseq
      %v2078 = vshrl.u32 %v2077, 7
      %v2079 = vsub.s32 0, %v2078
      %v2080 = vrot.slane %v2075, %v2079
      %v2082 = vadd.f32 %v2059, %v2080
      %v2083 = vadd.f32 %v2060, %v2080
      %v2084 = vadd.f32 %v2061, %v2080
      %v2085 = vadd.f32 %v2062, %v2080
      %v2086 = vadd.f32 %v2063, %v2080
      %v2087 = vadd.f32 %v2064, %v2080
      %v2088 = vadd.f32 %v2065, %v2080
      %v2089 = vadd.f32 %v2066, %v2080
      %v2090 = vadd.f32 %v2067, %v2080
      %v2091 = vadd.f32 %v2068, %v2080
      %v2092 = vadd.f32 %v2069, %v2080
      %v2093 = vadd.f32 %v2070, %v2080
      %v2094 = vadd.f32 %v2071, %v2080
      %v2095 = vadd.f32 %v2072, %v2080
      %v2096 = vadd.f32 %v2073, %v2080
      %v2097 = vadd.f32 %v2074, %v2080
      %v2098 = vld [vmem:[%s10] sm:$0xff]
      %v2099 = vld [vmem:[%s10 + $0x8] sm:$0xff]
      %v2100 = vld [vmem:[%s10 + $0x10] sm:$0xff]
      %v2101 = vld [vmem:[%s10 + $0x18] sm:$0xff]
      %v2102 = vld [vmem:[%s10 + $0x20] sm:$0xff]
      %v2103 = vld [vmem:[%s10 + $0x28] sm:$0xff]
      %v2104 = vld [vmem:[%s10 + $0x30] sm:$0xff]
      %v2105 = vld [vmem:[%s10 + $0x38] sm:$0xff]
      %v2106 = vld [vmem:[%s10 + $0x40] sm:$0xff]
      %v2107 = vld [vmem:[%s10 + $0x48] sm:$0xff]
      %v2108 = vld [vmem:[%s10 + $0x50] sm:$0xff]
      %v2109 = vld [vmem:[%s10 + $0x58] sm:$0xff]
      %v2110 = vld [vmem:[%s10 + $0x60] sm:$0xff]
      %v2111 = vld [vmem:[%s10 + $0x68] sm:$0xff]
      %v2112 = vld [vmem:[%s10 + $0x70] sm:$0xff]
      %v2113 = vld [vmem:[%s10 + $0x78] sm:$0xff]
      %v2114 = vld [vmem:[%s11] sm:$0xff]
      %v2115 = vld [vmem:[%s11 + $0x8] sm:$0xff]
      %v2116 = vld [vmem:[%s11 + $0x10] sm:$0xff]
      %v2117 = vld [vmem:[%s11 + $0x18] sm:$0xff]
      %v2118 = vld [vmem:[%s11 + $0x20] sm:$0xff]
      %v2119 = vld [vmem:[%s11 + $0x28] sm:$0xff]
      %v2120 = vld [vmem:[%s11 + $0x30] sm:$0xff]
      %v2121 = vld [vmem:[%s11 + $0x38] sm:$0xff]
      %v2122 = vld [vmem:[%s11 + $0x40] sm:$0xff]
      %v2123 = vld [vmem:[%s11 + $0x48] sm:$0xff]
      %v2124 = vld [vmem:[%s11 + $0x50] sm:$0xff]
      %v2125 = vld [vmem:[%s11 + $0x58] sm:$0xff]
      %v2126 = vld [vmem:[%s11 + $0x60] sm:$0xff]
      %v2127 = vld [vmem:[%s11 + $0x68] sm:$0xff]
      %v2128 = vld [vmem:[%s11 + $0x70] sm:$0xff]
      %v2129 = vld [vmem:[%s11 + $0x78] sm:$0xff]
      %2130 = vmatprep.subr.mxu0 0.0
      %2131 = vmatpush1.msra.mxu0 %v2114
      %2132 = vmatprep.subr.mxu0 0.0
      %2133 = vmatpush1.msra.mxu0 %v2115
      %2134 = vmatprep.subr.mxu0 0.0
      %2135 = vmatpush1.msra.mxu0 %v2116
      %2136 = vmatprep.subr.mxu0 0.0
      %2137 = vmatpush1.msra.mxu0 %v2117
      %2138 = vmatprep.subr.mxu0 0.0
      %2139 = vmatpush1.msra.mxu0 %v2118
      %2140 = vmatprep.subr.mxu0 0.0
      %2141 = vmatpush1.msra.mxu0 %v2119
      %2142 = vmatprep.subr.mxu0 0.0
      %2143 = vmatpush1.msra.mxu0 %v2120
      %2144 = vmatprep.subr.mxu0 0.0
      %2145 = vmatpush1.msra.mxu0 %v2121
      %2146 = vmatprep.subr.mxu0 0.0
      %2147 = vmatpush1.msra.mxu0 %v2122
      %2148 = vmatprep.subr.mxu0 0.0
      %2149 = vmatpush1.msra.mxu0 %v2123
      %2150 = vmatprep.subr.mxu0 0.0
      %2151 = vmatpush1.msra.mxu0 %v2124
      %2152 = vmatprep.subr.mxu0 0.0
      %2153 = vmatpush1.msra.mxu0 %v2125
      %2154 = vmatprep.subr.mxu0 0.0
      %2155 = vmatpush1.msra.mxu0 %v2126
      %2156 = vmatprep.subr.mxu0 0.0
      %2157 = vmatpush1.msra.mxu0 %v2127
      %2158 = vmatprep.subr.mxu0 0.0
      %2159 = vmatpush1.msra.mxu0 %v2128
      %2160 = vmatprep.subr.mxu0 0.0
      %2161 = vmatpush1.msra.mxu0 %v2129
      %2162 = vmatprep.subr.mxu0 0.0
      %2163 = vmatpush1.msra.mxu0 0.0
      %2164 = vmatprep.subr.mxu0 0.0
      %2165 = vmatpush1.msra.mxu0 0.0
      %2166 = vmatprep.subr.mxu0 0.0
      %2167 = vmatpush1.msra.mxu0 0.0
      %2168 = vmatprep.subr.mxu0 0.0
      %2169 = vmatpush1.msra.mxu0 0.0
      %2170 = vmatprep.subr.mxu0 0.0
      %2171 = vmatpush1.msra.mxu0 0.0
      %2172 = vmatprep.subr.mxu0 0.0
      %2173 = vmatpush1.msra.mxu0 0.0
      %2174 = vmatprep.subr.mxu0 0.0
      %2175 = vmatpush1.msra.mxu0 0.0
      %2176 = vmatprep.subr.mxu0 0.0
      %2177 = vmatpush1.msra.mxu0 0.0
      %2178 = vmatprep.subr.mxu0 0.0
      %2179 = vmatpush1.msra.mxu0 0.0
      %2180 = vmatprep.subr.mxu0 0.0
      %2181 = vmatpush1.msra.mxu0 0.0
      %2182 = vmatprep.subr.mxu0 0.0
      %2183 = vmatpush1.msra.mxu0 0.0
      %2184 = vmatprep.subr.mxu0 0.0
      %2185 = vmatpush1.msra.mxu0 0.0
      %2186 = vmatprep.subr.mxu0 0.0
      %2187 = vmatpush1.msra.mxu0 0.0
      %2188 = vmatprep.subr.mxu0 0.0
      %2189 = vmatpush1.msra.mxu0 0.0
      %2190 = vmatprep.subr.mxu0 0.0
      %2191 = vmatpush1.msra.mxu0 0.0
      %2192 = vmatprep.subr.mxu0 0.0
      %2193 = vmatpush1.msra.mxu0 0.0
      %2194 = vmatprep.mubr.f32.mxu0 0.0
      %2195 = vmatmul.mubr.f32.gmra.mrb[0].mxu0 %v2082
      %v2196 = vpop.f32.mrb[0].mxu0
      %v2197 = vadd.f32 0.0, %v2196
      %v2198 = vpop.f32.mrb[0].mxu0
      %2199 = vmatprep.mubr.f32.mxu0 0.0
      %2200 = vmatmul.mubr.f32.gmra.mrb[0].mxu0 %v2083
      %v2201 = vpop.f32.mrb[0].mxu0
      %v2202 = vadd.f32 0.0, %v2201
      %v2203 = vpop.f32.mrb[0].mxu0
      %2204 = vmatprep.mubr.f32.mxu0 0.0
      %2205 = vmatmul.mubr.f32.gmra.mrb[0].mxu0 %v2084
      %v2206 = vpop.f32.mrb[0].mxu0
      %v2207 = vadd.f32 0.0, %v2206
      %v2208 = vpop.f32.mrb[0].mxu0
      %2209 = vmatprep.mubr.f32.mxu0 0.0
      %2210 = vmatmul.mubr.f32.gmra.mrb[0].mxu0 %v2085
      %v2211 = vpop.f32.mrb[0].mxu0
      %v2212 = vadd.f32 0.0, %v2211
      %v2213 = vpop.f32.mrb[0].mxu0
      %2214 = vmatprep.mubr.f32.mxu0 0.0
      %2215 = vmatmul.mubr.f32.gmra.mrb[0].mxu0 %v2086
      %v2216 = vpop.f32.mrb[0].mxu0
      %v2217 = vadd.f32 0.0, %v2216
      %v2218 = vpop.f32.mrb[0].mxu0
      %2219 = vmatprep.mubr.f32.mxu0 0.0
      %2220 = vmatmul.mubr.f32.gmra.mrb[0].mxu0 %v2087
      %v2221 = vpop.f32.mrb[0].mxu0
      %v2222 = vadd.f32 0.0, %v2221
      %v2223 = vpop.f32.mrb[0].mxu0
      %2224 = vmatprep.mubr.f32.mxu0 0.0
      %2225 = vmatmul.mubr.f32.gmra.mrb[0].mxu0 %v2088
      %v2226 = vpop.f32.mrb[0].mxu0
      %v2227 = vadd.f32 0.0, %v2226
      %v2228 = vpop.f32.mrb[0].mxu0
      %2229 = vmatprep.mubr.f32.mxu0 0.0
      %2230 = vmatmul.mubr.f32.gmra.mrb[0].mxu0 %v2089
      %v2231 = vpop.f32.mrb[0].mxu0
      %v2232 = vadd.f32 0.0, %v2231
      %v2233 = vpop.f32.mrb[0].mxu0
      %2234 = vmatprep.mubr.f32.mxu0 0.0
      %2235 = vmatmul.mubr.f32.gmra.mrb[0].mxu0 %v2090
      %v2236 = vpop.f32.mrb[0].mxu0
      %v2237 = vadd.f32 0.0, %v2236
      %v2238 = vpop.f32.mrb[0].mxu0
      %2239 = vmatprep.mubr.f32.mxu0 0.0
      %2240 = vmatmul.mubr.f32.gmra.mrb[0].mxu0 %v2091
      %v2241 = vpop.f32.mrb[0].mxu0
      %v2242 = vadd.f32 0.0, %v2241
      %v2243 = vpop.f32.mrb[0].mxu0
      %2244 = vmatprep.mubr.f32.mxu0 0.0
      %2245 = vmatmul.mubr.f32.gmra.mrb[0].mxu0 %v2092
      %v2246 = vpop.f32.mrb[0].mxu0
      %v2247 = vadd.f32 0.0, %v2246
      %v2248 = vpop.f32.mrb[0].mxu0
      %2249 = vmatprep.mubr.f32.mxu0 0.0
      %2250 = vmatmul.mubr.f32.gmra.mrb[0].mxu0 %v2093
      %v2251 = vpop.f32.mrb[0].mxu0
      %v2252 = vadd.f32 0.0, %v2251
      %v2253 = vpop.f32.mrb[0].mxu0
      %2254 = vmatprep.mubr.f32.mxu0 0.0
      %2255 = vmatmul.mubr.f32.gmra.mrb[0].mxu0 %v2094
      %v2256 = vpop.f32.mrb[0].mxu0
      %v2257 = vadd.f32 0.0, %v2256
      %v2258 = vpop.f32.mrb[0].mxu0
      %2259 = vmatprep.mubr.f32.mxu0 0.0
      %2260 = vmatmul.mubr.f32.gmra.mrb[0].mxu0 %v2095
      %v2261 = vpop.f32.mrb[0].mxu0
      %v2262 = vadd.f32 0.0, %v2261
      %v2263 = vpop.f32.mrb[0].mxu0
      %2264 = vmatprep.mubr.f32.mxu0 0.0
      %2265 = vmatmul.mubr.f32.gmra.mrb[0].mxu0 %v2096
      %v2266 = vpop.f32.mrb[0].mxu0
      %v2267 = vadd.f32 0.0, %v2266
      %v2268 = vpop.f32.mrb[0].mxu0
      %2269 = vmatprep.mubr.f32.mxu0 0.0
      %2270 = vmatmul.mubr.f32.gmra.mrb[0].mxu0 %v2097
      %v2271 = vpop.f32.mrb[0].mxu0
      %v2272 = vadd.f32 0.0, %v2271
      %v2273 = vpop.f32.mrb[0].mxu0
      %2274 = vdwg.mxu0
      %2275 = vmatprep.subr.mxu0 0.0
      %2276 = vmatpush1.msra.mxu0 %v2098
      %2277 = vmatprep.subr.mxu0 0.0
      %2278 = vmatpush1.msra.mxu0 %v2099
      %2279 = vmatprep.subr.mxu0 0.0
      %2280 = vmatpush1.msra.mxu0 %v2100
      %2281 = vmatprep.subr.mxu0 0.0
      %2282 = vmatpush1.msra.mxu0 %v2101
      %2283 = vmatprep.subr.mxu0 0.0
      %2284 = vmatpush1.msra.mxu0 %v2102
      %2285 = vmatprep.subr.mxu0 0.0
      %2286 = vmatpush1.msra.mxu0 %v2103
      %2287 = vmatprep.subr.mxu0 0.0
      %2288 = vmatpush1.msra.mxu0 %v2104
      %2289 = vmatprep.subr.mxu0 0.0
      %2290 = vmatpush1.msra.mxu0 %v2105
      %2291 = vmatprep.subr.mxu0 0.0
      %2292 = vmatpush1.msra.mxu0 %v2106
      %2293 = vmatprep.subr.mxu0 0.0
      %2294 = vmatpush1.msra.mxu0 %v2107
      %2295 = vmatprep.subr.mxu0 0.0
      %2296 = vmatpush1.msra.mxu0 %v2108
      %2297 = vmatprep.subr.mxu0 0.0
      %2298 = vmatpush1.msra.mxu0 %v2109
      %2299 = vmatprep.subr.mxu0 0.0
      %2300 = vmatpush1.msra.mxu0 %v2110
      %2301 = vmatprep.subr.mxu0 0.0
      %2302 = vmatpush1.msra.mxu0 %v2111
      %2303 = vmatprep.subr.mxu0 0.0
      %2304 = vmatpush1.msra.mxu0 %v2112
      %2305 = vmatprep.subr.mxu0 0.0
      %2306 = vmatpush1.msra.mxu0 %v2113
      %2307 = vmatprep.subr.mxu0 0.0
      %2308 = vmatpush1.msra.mxu0 0.0
      %2309 = vmatprep.subr.mxu0 0.0
      %2310 = vmatpush1.msra.mxu0 0.0
      %2311 = vmatprep.subr.mxu0 0.0
      %2312 = vmatpush1.msra.mxu0 0.0
      %2313 = vmatprep.subr.mxu0 0.0
      %2314 = vmatpush1.msra.mxu0 0.0
      %2315 = vmatprep.subr.mxu0 0.0
      %2316 = vmatpush1.msra.mxu0 0.0
      %2317 = vmatprep.subr.mxu0 0.0
      %2318 = vmatpush1.msra.mxu0 0.0
      %2319 = vmatprep.subr.mxu0 0.0
      %2320 = vmatpush1.msra.mxu0 0.0
      %2321 = vmatprep.subr.mxu0 0.0
      %2322 = vmatpush1.msra.mxu0 0.0
      %2323 = vmatprep.subr.mxu0 0.0
      %2324 = vmatpush1.msra.mxu0 0.0
      %2325 = vmatprep.subr.mxu0 0.0
      %2326 = vmatpush1.msra.mxu0 0.0
      %2327 = vmatprep.subr.mxu0 0.0
      %2328 = vmatpush1.msra.mxu0 0.0
      %2329 = vmatprep.subr.mxu0 0.0
      %2330 = vmatpush1.msra.mxu0 0.0
      %2331 = vmatprep.subr.mxu0 0.0
      %2332 = vmatpush1.msra.mxu0 0.0
      %2333 = vmatprep.subr.mxu0 0.0
      %2334 = vmatpush1.msra.mxu0 0.0
      %2335 = vmatprep.subr.mxu0 0.0
      %2336 = vmatpush1.msra.mxu0 0.0
      %2337 = vmatprep.subr.mxu0 0.0
      %2338 = vmatpush1.msra.mxu0 0.0
      %2339 = vmatprep.mubr.f32.mxu0 0.0
      %2340 = vmatmul.mubr.f32.gmra.mrb[0].mxu0 %v1770
      %v2341 = vpop.f32.mrb[0].mxu0
      %v2342 = vadd.f32 %v2197, %v2341
      %v2343 = vpop.f32.mrb[0].mxu0
      %2344 = vmatprep.mubr.f32.mxu0 0.0
      %2345 = vmatmul.mubr.f32.gmra.mrb[0].mxu0 %v1771
      %v2346 = vpop.f32.mrb[0].mxu0
      %v2347 = vadd.f32 %v2202, %v2346
      %v2348 = vpop.f32.mrb[0].mxu0
      %2349 = vmatprep.mubr.f32.mxu0 0.0
      %2350 = vmatmul.mubr.f32.gmra.mrb[0].mxu0 %v1772
      %v2351 = vpop.f32.mrb[0].mxu0
      %v2352 = vadd.f32 %v2207, %v2351
      %v2353 = vpop.f32.mrb[0].mxu0
      %2354 = vmatprep.mubr.f32.mxu0 0.0
      %2355 = vmatmul.mubr.f32.gmra.mrb[0].mxu0 %v1773
      %v2356 = vpop.f32.mrb[0].mxu0
      %v2357 = vadd.f32 %v2212, %v2356
      %v2358 = vpop.f32.mrb[0].mxu0
      %2359 = vmatprep.mubr.f32.mxu0 0.0
      %2360 = vmatmul.mubr.f32.gmra.mrb[0].mxu0 %v1774
      %v2361 = vpop.f32.mrb[0].mxu0
      %v2362 = vadd.f32 %v2217, %v2361
      %v2363 = vpop.f32.mrb[0].mxu0
      %2364 = vmatprep.mubr.f32.mxu0 0.0
      %2365 = vmatmul.mubr.f32.gmra.mrb[0].mxu0 %v1775
      %v2366 = vpop.f32.mrb[0].mxu0
      %v2367 = vadd.f32 %v2222, %v2366
      %v2368 = vpop.f32.mrb[0].mxu0
      %2369 = vmatprep.mubr.f32.mxu0 0.0
      %2370 = vmatmul.mubr.f32.gmra.mrb[0].mxu0 %v1776
      %v2371 = vpop.f32.mrb[0].mxu0
      %v2372 = vadd.f32 %v2227, %v2371
      %v2373 = vpop.f32.mrb[0].mxu0
      %2374 = vmatprep.mubr.f32.mxu0 0.0
      %2375 = vmatmul.mubr.f32.gmra.mrb[0].mxu0 %v1777
      %v2376 = vpop.f32.mrb[0].mxu0
      %v2377 = vadd.f32 %v2232, %v2376
      %v2378 = vpop.f32.mrb[0].mxu0
      %2379 = vmatprep.mubr.f32.mxu0 0.0
      %2380 = vmatmul.mubr.f32.gmra.mrb[0].mxu0 %v1778
      %v2381 = vpop.f32.mrb[0].mxu0
      %v2382 = vadd.f32 %v2237, %v2381
      %v2383 = vpop.f32.mrb[0].mxu0
      %2384 = vmatprep.mubr.f32.mxu0 0.0
      %2385 = vmatmul.mubr.f32.gmra.mrb[0].mxu0 %v1779
      %v2386 = vpop.f32.mrb[0].mxu0
      %v2387 = vadd.f32 %v2242, %v2386
      %v2388 = vpop.f32.mrb[0].mxu0
      %2389 = vmatprep.mubr.f32.mxu0 0.0
      %2390 = vmatmul.mubr.f32.gmra.mrb[0].mxu0 %v1780
      %v2391 = vpop.f32.mrb[0].mxu0
      %v2392 = vadd.f32 %v2247, %v2391
      %v2393 = vpop.f32.mrb[0].mxu0
      %2394 = vmatprep.mubr.f32.mxu0 0.0
      %2395 = vmatmul.mubr.f32.gmra.mrb[0].mxu0 %v1781
      %v2396 = vpop.f32.mrb[0].mxu0
      %v2397 = vadd.f32 %v2252, %v2396
      %v2398 = vpop.f32.mrb[0].mxu0
      %2399 = vmatprep.mubr.f32.mxu0 0.0
      %2400 = vmatmul.mubr.f32.gmra.mrb[0].mxu0 %v1782
      %v2401 = vpop.f32.mrb[0].mxu0
      %v2402 = vadd.f32 %v2257, %v2401
      %v2403 = vpop.f32.mrb[0].mxu0
      %2404 = vmatprep.mubr.f32.mxu0 0.0
      %2405 = vmatmul.mubr.f32.gmra.mrb[0].mxu0 %v1783
      %v2406 = vpop.f32.mrb[0].mxu0
      %v2407 = vadd.f32 %v2262, %v2406
      %v2408 = vpop.f32.mrb[0].mxu0
      %2409 = vmatprep.mubr.f32.mxu0 0.0
      %2410 = vmatmul.mubr.f32.gmra.mrb[0].mxu0 %v1784
      %v2411 = vpop.f32.mrb[0].mxu0
      %v2412 = vadd.f32 %v2267, %v2411
      %v2413 = vpop.f32.mrb[0].mxu0
      %2414 = vmatprep.mubr.f32.mxu0 0.0
      %2415 = vmatmul.mubr.f32.gmra.mrb[0].mxu0 %v1785
      %v2416 = vpop.f32.mrb[0].mxu0
      %v2417 = vadd.f32 %v2272, %v2416
      %v2418 = vpop.f32.mrb[0].mxu0
      %2419 = vdwg.mxu0
      %v2420 = vld [vmem:[%s12] sm:$0x1]
      %v2422 = vlaneseq
      %v2423 = vshrl.u32 %v2422, 7
      %v2424 = vsub.s32 0, %v2423
      %v2425 = vrot.slane %v2420, %v2424
      %v2427 = vadd.f32 %v2342, %v2425
      %v2428 = vadd.f32 %v2347, %v2425
      %v2429 = vadd.f32 %v2352, %v2425
      %v2430 = vadd.f32 %v2357, %v2425
      %v2431 = vadd.f32 %v2362, %v2425
      %v2432 = vadd.f32 %v2367, %v2425
      %v2433 = vadd.f32 %v2372, %v2425
      %v2434 = vadd.f32 %v2377, %v2425
      %v2435 = vadd.f32 %v2382, %v2425
      %v2436 = vadd.f32 %v2387, %v2425
      %v2437 = vadd.f32 %v2392, %v2425
      %v2438 = vadd.f32 %v2397, %v2425
      %v2439 = vadd.f32 %v2402, %v2425
      %v2440 = vadd.f32 %v2407, %v2425
      %v2441 = vadd.f32 %v2412, %v2425
      %v2442 = vadd.f32 %v2417, %v2425
      %v2443 = vld [vmem:[%s13] sm:$0xff]
      %v2444 = vld [vmem:[%s13 + $0x8] sm:$0xff]
      %v2445 = vld [vmem:[%s13 + $0x10] sm:$0xff]
      %v2446 = vld [vmem:[%s13 + $0x18] sm:$0xff]
      %v2447 = vld [vmem:[%s13 + $0x20] sm:$0xff]
      %v2448 = vld [vmem:[%s13 + $0x28] sm:$0xff]
      %v2449 = vld [vmem:[%s13 + $0x30] sm:$0xff]
      %v2450 = vld [vmem:[%s13 + $0x38] sm:$0xff]
      %v2451 = vld [vmem:[%s13 + $0x40] sm:$0xff]
      %v2452 = vld [vmem:[%s13 + $0x48] sm:$0xff]
      %v2453 = vld [vmem:[%s13 + $0x50] sm:$0xff]
      %v2454 = vld [vmem:[%s13 + $0x58] sm:$0xff]
      %v2455 = vld [vmem:[%s13 + $0x60] sm:$0xff]
      %v2456 = vld [vmem:[%s13 + $0x68] sm:$0xff]
      %v2457 = vld [vmem:[%s13 + $0x70] sm:$0xff]
      %v2458 = vld [vmem:[%s13 + $0x78] sm:$0xff]
      %v2459 = vld [vmem:[%s14] sm:$0x1]
      %v2461 = vlaneseq
      %v2462 = vshrl.u32 %v2461, 7
      %v2463 = vsub.s32 0, %v2462
      %v2464 = vrot.slane %v2459, %v2463
      %2466 = vmatprep.subr.mxu0 0.0
      %2467 = vmatpush1.msra.mxu0 %v2443
      %2468 = vmatprep.subr.mxu0 0.0
      %2469 = vmatpush1.msra.mxu0 %v2444
      %2470 = vmatprep.subr.mxu0 0.0
      %2471 = vmatpush1.msra.mxu0 %v2445
      %2472 = vmatprep.subr.mxu0 0.0
      %2473 = vmatpush1.msra.mxu0 %v2446
      %2474 = vmatprep.subr.mxu0 0.0
      %2475 = vmatpush1.msra.mxu0 %v2447
      %2476 = vmatprep.subr.mxu0 0.0
      %2477 = vmatpush1.msra.mxu0 %v2448
      %2478 = vmatprep.subr.mxu0 0.0
      %2479 = vmatpush1.msra.mxu0 %v2449
      %2480 = vmatprep.subr.mxu0 0.0
      %2481 = vmatpush1.msra.mxu0 %v2450
      %2482 = vmatprep.subr.mxu0 0.0
      %2483 = vmatpush1.msra.mxu0 %v2451
      %2484 = vmatprep.subr.mxu0 0.0
      %2485 = vmatpush1.msra.mxu0 %v2452
      %2486 = vmatprep.subr.mxu0 0.0
      %2487 = vmatpush1.msra.mxu0 %v2453
      %2488 = vmatprep.subr.mxu0 0.0
      %2489 = vmatpush1.msra.mxu0 %v2454
      %2490 = vmatprep.subr.mxu0 0.0
      %2491 = vmatpush1.msra.mxu0 %v2455
      %2492 = vmatprep.subr.mxu0 0.0
      %2493 = vmatpush1.msra.mxu0 %v2456
      %2494 = vmatprep.subr.mxu0 0.0
      %2495 = vmatpush1.msra.mxu0 %v2457
      %2496 = vmatprep.subr.mxu0 0.0
      %2497 = vmatpush1.msra.mxu0 %v2458
      %2498 = vmatprep.subr.mxu0 0.0
      %2499 = vmatpush1.msra.mxu0 0.0
      %2500 = vmatprep.subr.mxu0 0.0
      %2501 = vmatpush1.msra.mxu0 0.0
      %2502 = vmatprep.subr.mxu0 0.0
      %2503 = vmatpush1.msra.mxu0 0.0
      %2504 = vmatprep.subr.mxu0 0.0
      %2505 = vmatpush1.msra.mxu0 0.0
      %2506 = vmatprep.subr.mxu0 0.0
      %2507 = vmatpush1.msra.mxu0 0.0
      %2508 = vmatprep.subr.mxu0 0.0
      %2509 = vmatpush1.msra.mxu0 0.0
      %2510 = vmatprep.subr.mxu0 0.0
      %2511 = vmatpush1.msra.mxu0 0.0
      %2512 = vmatprep.subr.mxu0 0.0
      %2513 = vmatpush1.msra.mxu0 0.0
      %2514 = vmatprep.subr.mxu0 0.0
      %2515 = vmatpush1.msra.mxu0 0.0
      %2516 = vmatprep.subr.mxu0 0.0
      %2517 = vmatpush1.msra.mxu0 0.0
      %2518 = vmatprep.subr.mxu0 0.0
      %2519 = vmatpush1.msra.mxu0 0.0
      %2520 = vmatprep.subr.mxu0 0.0
      %2521 = vmatpush1.msra.mxu0 0.0
      %2522 = vmatprep.subr.mxu0 0.0
      %2523 = vmatpush1.msra.mxu0 0.0
      %2524 = vmatprep.subr.mxu0 0.0
      %2525 = vmatpush1.msra.mxu0 0.0
      %2526 = vmatprep.subr.mxu0 0.0
      %2527 = vmatpush1.msra.mxu0 0.0
      %2528 = vmatprep.subr.mxu0 0.0
      %2529 = vmatpush1.msra.mxu0 0.0
      %2530 = vmatprep.mubr.f32.mxu0 0.0
      %2531 = vmatmul.mubr.f32.gmra.mrb[0].mxu0 %v2427
      %v2532 = vpop.f32.mrb[0].mxu0
      %v2533 = vadd.f32 %v2464, %v2532
      %v2534 = vpop.f32.mrb[0].mxu0
      %2535 = vmatprep.mubr.f32.mxu0 0.0
      %2536 = vmatmul.mubr.f32.gmra.mrb[0].mxu0 %v2428
      %v2537 = vpop.f32.mrb[0].mxu0
      %v2538 = vadd.f32 %v2464, %v2537
      %v2539 = vpop.f32.mrb[0].mxu0
      %2540 = vmatprep.mubr.f32.mxu0 0.0
      %2541 = vmatmul.mubr.f32.gmra.mrb[0].mxu0 %v2429
      %v2542 = vpop.f32.mrb[0].mxu0
      %v2543 = vadd.f32 %v2464, %v2542
      %v2544 = vpop.f32.mrb[0].mxu0
      %2545 = vmatprep.mubr.f32.mxu0 0.0
      %2546 = vmatmul.mubr.f32.gmra.mrb[0].mxu0 %v2430
      %v2547 = vpop.f32.mrb[0].mxu0
      %v2548 = vadd.f32 %v2464, %v2547
      %v2549 = vpop.f32.mrb[0].mxu0
      %2550 = vmatprep.mubr.f32.mxu0 0.0
      %2551 = vmatmul.mubr.f32.gmra.mrb[0].mxu0 %v2431
      %v2552 = vpop.f32.mrb[0].mxu0
      %v2553 = vadd.f32 %v2464, %v2552
      %v2554 = vpop.f32.mrb[0].mxu0
      %2555 = vmatprep.mubr.f32.mxu0 0.0
      %2556 = vmatmul.mubr.f32.gmra.mrb[0].mxu0 %v2432
      %v2557 = vpop.f32.mrb[0].mxu0
      %v2558 = vadd.f32 %v2464, %v2557
      %v2559 = vpop.f32.mrb[0].mxu0
      %2560 = vmatprep.mubr.f32.mxu0 0.0
      %2561 = vmatmul.mubr.f32.gmra.mrb[0].mxu0 %v2433
      %v2562 = vpop.f32.mrb[0].mxu0
      %v2563 = vadd.f32 %v2464, %v2562
      %v2564 = vpop.f32.mrb[0].mxu0
      %2565 = vmatprep.mubr.f32.mxu0 0.0
      %2566 = vmatmul.mubr.f32.gmra.mrb[0].mxu0 %v2434
      %v2567 = vpop.f32.mrb[0].mxu0
      %v2568 = vadd.f32 %v2464, %v2567
      %v2569 = vpop.f32.mrb[0].mxu0
      %2570 = vmatprep.mubr.f32.mxu0 0.0
      %2571 = vmatmul.mubr.f32.gmra.mrb[0].mxu0 %v2435
      %v2572 = vpop.f32.mrb[0].mxu0
      %v2573 = vadd.f32 %v2464, %v2572
      %v2574 = vpop.f32.mrb[0].mxu0
      %2575 = vmatprep.mubr.f32.mxu0 0.0
      %2576 = vmatmul.mubr.f32.gmra.mrb[0].mxu0 %v2436
      %v2577 = vpop.f32.mrb[0].mxu0
      %v2578 = vadd.f32 %v2464, %v2577
      %v2579 = vpop.f32.mrb[0].mxu0
      %2580 = vmatprep.mubr.f32.mxu0 0.0
      %2581 = vmatmul.mubr.f32.gmra.mrb[0].mxu0 %v2437
      %v2582 = vpop.f32.mrb[0].mxu0
      %v2583 = vadd.f32 %v2464, %v2582
      %v2584 = vpop.f32.mrb[0].mxu0
      %2585 = vmatprep.mubr.f32.mxu0 0.0
      %2586 = vmatmul.mubr.f32.gmra.mrb[0].mxu0 %v2438
      %v2587 = vpop.f32.mrb[0].mxu0
      %v2588 = vadd.f32 %v2464, %v2587
      %v2589 = vpop.f32.mrb[0].mxu0
      %2590 = vmatprep.mubr.f32.mxu0 0.0
      %2591 = vmatmul.mubr.f32.gmra.mrb[0].mxu0 %v2439
      %v2592 = vpop.f32.mrb[0].mxu0
      %v2593 = vadd.f32 %v2464, %v2592
      %v2594 = vpop.f32.mrb[0].mxu0
      %2595 = vmatprep.mubr.f32.mxu0 0.0
      %2596 = vmatmul.mubr.f32.gmra.mrb[0].mxu0 %v2440
      %v2597 = vpop.f32.mrb[0].mxu0
      %v2598 = vadd.f32 %v2464, %v2597
      %v2599 = vpop.f32.mrb[0].mxu0
      %2600 = vmatprep.mubr.f32.mxu0 0.0
      %2601 = vmatmul.mubr.f32.gmra.mrb[0].mxu0 %v2441
      %v2602 = vpop.f32.mrb[0].mxu0
      %v2603 = vadd.f32 %v2464, %v2602
      %v2604 = vpop.f32.mrb[0].mxu0
      %2605 = vmatprep.mubr.f32.mxu0 0.0
      %2606 = vmatmul.mubr.f32.gmra.mrb[0].mxu0 %v2442
      %v2607 = vpop.f32.mrb[0].mxu0
      %v2608 = vadd.f32 %v2464, %v2607
      %v2609 = vpop.f32.mrb[0].mxu0
      %2610 = vdwg.mxu0
      %v2611 = vmax.f32 %v2533, 0.0
      %v2612 = vmax.f32 %v2538, 0.0
      %v2613 = vmax.f32 %v2543, 0.0
      %v2614 = vmax.f32 %v2548, 0.0
      %v2615 = vmax.f32 %v2553, 0.0
      %v2616 = vmax.f32 %v2558, 0.0
      %v2617 = vmax.f32 %v2563, 0.0
      %v2618 = vmax.f32 %v2568, 0.0
      %v2619 = vmax.f32 %v2573, 0.0
      %v2620 = vmax.f32 %v2578, 0.0
      %v2621 = vmax.f32 %v2583, 0.0
      %v2622 = vmax.f32 %v2588, 0.0
      %v2623 = vmax.f32 %v2593, 0.0
      %v2624 = vmax.f32 %v2598, 0.0
      %v2625 = vmax.f32 %v2603, 0.0
      %v2626 = vmax.f32 %v2608, 0.0
      %v2627 = vsel %vm672, %v2611, 0.0
      %2628 = vadd.xlane.f32.xlu0 %v2627
      %v2629 = vpop.xlane.xlu0 %2628
      %v2630 = vsel %vm672, %v2612, 0.0
      %2631 = vadd.xlane.f32.xlu0 %v2630
      %v2632 = vpop.xlane.xlu0 %2631
      %v2633 = vsel %vm672, %v2613, 0.0
      %2634 = vadd.xlane.f32.xlu0 %v2633
      %v2635 = vpop.xlane.xlu0 %2634
      %v2636 = vsel %vm672, %v2614, 0.0
      %2637 = vadd.xlane.f32.xlu0 %v2636
      %v2638 = vpop.xlane.xlu0 %2637
      %v2639 = vsel %vm672, %v2615, 0.0
      %2640 = vadd.xlane.f32.xlu0 %v2639
      %v2641 = vpop.xlane.xlu0 %2640
      %v2642 = vsel %vm672, %v2616, 0.0
      %2643 = vadd.xlane.f32.xlu0 %v2642
      %v2644 = vpop.xlane.xlu0 %2643
      %v2645 = vsel %vm672, %v2617, 0.0
      %2646 = vadd.xlane.f32.xlu0 %v2645
      %v2647 = vpop.xlane.xlu0 %2646
      %v2648 = vsel %vm672, %v2618, 0.0
      %2649 = vadd.xlane.f32.xlu0 %v2648
      %v2650 = vpop.xlane.xlu0 %2649
      %v2651 = vsel %vm672, %v2619, 0.0
      %2652 = vadd.xlane.f32.xlu0 %v2651
      %v2653 = vpop.xlane.xlu0 %2652
      %v2654 = vsel %vm672, %v2620, 0.0
      %2655 = vadd.xlane.f32.xlu0 %v2654
      %v2656 = vpop.xlane.xlu0 %2655
      %v2657 = vsel %vm672, %v2621, 0.0
      %2658 = vadd.xlane.f32.xlu0 %v2657
      %v2659 = vpop.xlane.xlu0 %2658
      %v2660 = vsel %vm672, %v2622, 0.0
      %2661 = vadd.xlane.f32.xlu0 %v2660
      %v2662 = vpop.xlane.xlu0 %2661
      %v2663 = vsel %vm672, %v2623, 0.0
      %2664 = vadd.xlane.f32.xlu0 %v2663
      %v2665 = vpop.xlane.xlu0 %2664
      %v2666 = vsel %vm672, %v2624, 0.0
      %2667 = vadd.xlane.f32.xlu0 %v2666
      %v2668 = vpop.xlane.xlu0 %2667
      %v2669 = vsel %vm672, %v2625, 0.0
      %2670 = vadd.xlane.f32.xlu0 %v2669
      %v2671 = vpop.xlane.xlu0 %2670
      %v2672 = vsel %vm672, %v2626, 0.0
      %2673 = vadd.xlane.f32.xlu0 %v2672
      %v2674 = vpop.xlane.xlu0 %2673
      %v2675 = vrcp.pop 64.0
      %v2676 = vmul.f32 %v2629, %v2675
      %v2677 = vmul.f32 %v2632, %v2675
      %v2678 = vmul.f32 %v2635, %v2675
      %v2679 = vmul.f32 %v2638, %v2675
      %v2680 = vmul.f32 %v2641, %v2675
      %v2681 = vmul.f32 %v2644, %v2675
      %v2682 = vmul.f32 %v2647, %v2675
      %v2683 = vmul.f32 %v2650, %v2675
      %v2684 = vmul.f32 %v2653, %v2675
      %v2685 = vmul.f32 %v2656, %v2675
      %v2686 = vmul.f32 %v2659, %v2675
      %v2687 = vmul.f32 %v2662, %v2675
      %v2688 = vmul.f32 %v2665, %v2675
      %v2689 = vmul.f32 %v2668, %v2675
      %v2690 = vmul.f32 %v2671, %v2675
      %v2691 = vmul.f32 %v2674, %v2675
      %v2692 = vmul.f32 %v2611, %v2611
      %v2693 = vmul.f32 %v2612, %v2612
      %v2694 = vmul.f32 %v2613, %v2613
      %v2695 = vmul.f32 %v2614, %v2614
      %v2696 = vmul.f32 %v2615, %v2615
      %v2697 = vmul.f32 %v2616, %v2616
      %v2698 = vmul.f32 %v2617, %v2617
      %v2699 = vmul.f32 %v2618, %v2618
      %v2700 = vmul.f32 %v2619, %v2619
      %v2701 = vmul.f32 %v2620, %v2620
      %v2702 = vmul.f32 %v2621, %v2621
      %v2703 = vmul.f32 %v2622, %v2622
      %v2704 = vmul.f32 %v2623, %v2623
      %v2705 = vmul.f32 %v2624, %v2624
      %v2706 = vmul.f32 %v2625, %v2625
      %v2707 = vmul.f32 %v2626, %v2626
      %v2708 = vsel %vm672, %v2692, 0.0
      %2709 = vadd.xlane.f32.xlu0 %v2708
      %v2710 = vpop.xlane.xlu0 %2709
      %v2711 = vsel %vm672, %v2693, 0.0
      %2712 = vadd.xlane.f32.xlu0 %v2711
      %v2713 = vpop.xlane.xlu0 %2712
      %v2714 = vsel %vm672, %v2694, 0.0
      %2715 = vadd.xlane.f32.xlu0 %v2714
      %v2716 = vpop.xlane.xlu0 %2715
      %v2717 = vsel %vm672, %v2695, 0.0
      %2718 = vadd.xlane.f32.xlu0 %v2717
      %v2719 = vpop.xlane.xlu0 %2718
      %v2720 = vsel %vm672, %v2696, 0.0
      %2721 = vadd.xlane.f32.xlu0 %v2720
      %v2722 = vpop.xlane.xlu0 %2721
      %v2723 = vsel %vm672, %v2697, 0.0
      %2724 = vadd.xlane.f32.xlu0 %v2723
      %v2725 = vpop.xlane.xlu0 %2724
      %v2726 = vsel %vm672, %v2698, 0.0
      %2727 = vadd.xlane.f32.xlu0 %v2726
      %v2728 = vpop.xlane.xlu0 %2727
      %v2729 = vsel %vm672, %v2699, 0.0
      %2730 = vadd.xlane.f32.xlu0 %v2729
      %v2731 = vpop.xlane.xlu0 %2730
      %v2732 = vsel %vm672, %v2700, 0.0
      %2733 = vadd.xlane.f32.xlu0 %v2732
      %v2734 = vpop.xlane.xlu0 %2733
      %v2735 = vsel %vm672, %v2701, 0.0
      %2736 = vadd.xlane.f32.xlu0 %v2735
      %v2737 = vpop.xlane.xlu0 %2736
      %v2738 = vsel %vm672, %v2702, 0.0
      %2739 = vadd.xlane.f32.xlu0 %v2738
      %v2740 = vpop.xlane.xlu0 %2739
      %v2741 = vsel %vm672, %v2703, 0.0
      %2742 = vadd.xlane.f32.xlu0 %v2741
      %v2743 = vpop.xlane.xlu0 %2742
      %v2744 = vsel %vm672, %v2704, 0.0
      %2745 = vadd.xlane.f32.xlu0 %v2744
      %v2746 = vpop.xlane.xlu0 %2745
      %v2747 = vsel %vm672, %v2705, 0.0
      %2748 = vadd.xlane.f32.xlu0 %v2747
      %v2749 = vpop.xlane.xlu0 %2748
      %v2750 = vsel %vm672, %v2706, 0.0
      %2751 = vadd.xlane.f32.xlu0 %v2750
      %v2752 = vpop.xlane.xlu0 %2751
      %v2753 = vsel %vm672, %v2707, 0.0
      %2754 = vadd.xlane.f32.xlu0 %v2753
      %v2755 = vpop.xlane.xlu0 %2754
      %v2756 = vmul.f32 %v2710, %v2675
      %v2757 = vmul.f32 %v2713, %v2675
      %v2758 = vmul.f32 %v2716, %v2675
      %v2759 = vmul.f32 %v2719, %v2675
      %v2760 = vmul.f32 %v2722, %v2675
      %v2761 = vmul.f32 %v2725, %v2675
      %v2762 = vmul.f32 %v2728, %v2675
      %v2763 = vmul.f32 %v2731, %v2675
      %v2764 = vmul.f32 %v2734, %v2675
      %v2765 = vmul.f32 %v2737, %v2675
      %v2766 = vmul.f32 %v2740, %v2675
      %v2767 = vmul.f32 %v2743, %v2675
      %v2768 = vmul.f32 %v2746, %v2675
      %v2769 = vmul.f32 %v2749, %v2675
      %v2770 = vmul.f32 %v2752, %v2675
      %v2771 = vmul.f32 %v2755, %v2675
      %v2772 = vmul.f32 %v2676, %v2676
      %v2773 = vmul.f32 %v2677, %v2677
      %v2774 = vmul.f32 %v2678, %v2678
      %v2775 = vmul.f32 %v2679, %v2679
      %v2776 = vmul.f32 %v2680, %v2680
      %v2777 = vmul.f32 %v2681, %v2681
      %v2778 = vmul.f32 %v2682, %v2682
      %v2779 = vmul.f32 %v2683, %v2683
      %v2780 = vmul.f32 %v2684, %v2684
      %v2781 = vmul.f32 %v2685, %v2685
      %v2782 = vmul.f32 %v2686, %v2686
      %v2783 = vmul.f32 %v2687, %v2687
      %v2784 = vmul.f32 %v2688, %v2688
      %v2785 = vmul.f32 %v2689, %v2689
      %v2786 = vmul.f32 %v2690, %v2690
      %v2787 = vmul.f32 %v2691, %v2691
      %v2788 = vsub.f32 %v2756, %v2772
      %v2789 = vsub.f32 %v2757, %v2773
      %v2790 = vsub.f32 %v2758, %v2774
      %v2791 = vsub.f32 %v2759, %v2775
      %v2792 = vsub.f32 %v2760, %v2776
      %v2793 = vsub.f32 %v2761, %v2777
      %v2794 = vsub.f32 %v2762, %v2778
      %v2795 = vsub.f32 %v2763, %v2779
      %v2796 = vsub.f32 %v2764, %v2780
      %v2797 = vsub.f32 %v2765, %v2781
      %v2798 = vsub.f32 %v2766, %v2782
      %v2799 = vsub.f32 %v2767, %v2783
      %v2800 = vsub.f32 %v2768, %v2784
      %v2801 = vsub.f32 %v2769, %v2785
      %v2802 = vsub.f32 %v2770, %v2786
      %v2803 = vsub.f32 %v2771, %v2787
      %v2804 = vsub.f32 %v2611, %v2676
      %v2805 = vsub.f32 %v2612, %v2677
      %v2806 = vsub.f32 %v2613, %v2678
      %v2807 = vsub.f32 %v2614, %v2679
      %v2808 = vsub.f32 %v2615, %v2680
      %v2809 = vsub.f32 %v2616, %v2681
      %v2810 = vsub.f32 %v2617, %v2682
      %v2811 = vsub.f32 %v2618, %v2683
      %v2812 = vsub.f32 %v2619, %v2684
      %v2813 = vsub.f32 %v2620, %v2685
      %v2814 = vsub.f32 %v2621, %v2686
      %v2815 = vsub.f32 %v2622, %v2687
      %v2816 = vsub.f32 %v2623, %v2688
      %v2817 = vsub.f32 %v2624, %v2689
      %v2818 = vsub.f32 %v2625, %v2690
      %v2819 = vsub.f32 %v2626, %v2691
      %v2820 = vadd.f32 %v2788, 1e-05
      %v2821 = vadd.f32 %v2789, 1e-05
      %v2822 = vadd.f32 %v2790, 1e-05
      %v2823 = vadd.f32 %v2791, 1e-05
      %v2824 = vadd.f32 %v2792, 1e-05
      %v2825 = vadd.f32 %v2793, 1e-05
      %v2826 = vadd.f32 %v2794, 1e-05
      %v2827 = vadd.f32 %v2795, 1e-05
      %v2828 = vadd.f32 %v2796, 1e-05
      %v2829 = vadd.f32 %v2797, 1e-05
      %v2830 = vadd.f32 %v2798, 1e-05
      %v2831 = vadd.f32 %v2799, 1e-05
      %v2832 = vadd.f32 %v2800, 1e-05
      %v2833 = vadd.f32 %v2801, 1e-05
      %v2834 = vadd.f32 %v2802, 1e-05
      %v2835 = vadd.f32 %v2803, 1e-05
      %v2836 = vrsqrt.pop %v2820
      %v2837 = vrsqrt.pop %v2821
      %v2838 = vrsqrt.pop %v2822
      %v2839 = vrsqrt.pop %v2823
      %v2840 = vrsqrt.pop %v2824
      %v2841 = vrsqrt.pop %v2825
      %v2842 = vrsqrt.pop %v2826
      %v2843 = vrsqrt.pop %v2827
      %v2844 = vrsqrt.pop %v2828
      %v2845 = vrsqrt.pop %v2829
      %v2846 = vrsqrt.pop %v2830
      %v2847 = vrsqrt.pop %v2831
      %v2848 = vrsqrt.pop %v2832
      %v2849 = vrsqrt.pop %v2833
      %v2850 = vrsqrt.pop %v2834
      %v2851 = vrsqrt.pop %v2835
      %v2852 = vmul.f32 %v2804, %v2836
      %v2853 = vmul.f32 %v2805, %v2837
      %v2854 = vmul.f32 %v2806, %v2838
      %v2855 = vmul.f32 %v2807, %v2839
      %v2856 = vmul.f32 %v2808, %v2840
      %v2857 = vmul.f32 %v2809, %v2841
      %v2858 = vmul.f32 %v2810, %v2842
      %v2859 = vmul.f32 %v2811, %v2843
      %v2860 = vmul.f32 %v2812, %v2844
      %v2861 = vmul.f32 %v2813, %v2845
      %v2862 = vmul.f32 %v2814, %v2846
      %v2863 = vmul.f32 %v2815, %v2847
      %v2864 = vmul.f32 %v2816, %v2848
      %v2865 = vmul.f32 %v2817, %v2849
      %v2866 = vmul.f32 %v2818, %v2850
      %v2867 = vmul.f32 %v2819, %v2851
      %v2868 = vld [vmem:[%s15] sm:$0x1]
      %v2870 = vlaneseq
      %v2871 = vshrl.u32 %v2870, 7
      %v2872 = vsub.s32 0, %v2871
      %v2873 = vrot.slane %v2868, %v2872
      %v2875 = vmul.f32 %v2852, %v2873
      %v2876 = vmul.f32 %v2853, %v2873
      %v2877 = vmul.f32 %v2854, %v2873
      %v2878 = vmul.f32 %v2855, %v2873
      %v2879 = vmul.f32 %v2856, %v2873
      %v2880 = vmul.f32 %v2857, %v2873
      %v2881 = vmul.f32 %v2858, %v2873
      %v2882 = vmul.f32 %v2859, %v2873
      %v2883 = vmul.f32 %v2860, %v2873
      %v2884 = vmul.f32 %v2861, %v2873
      %v2885 = vmul.f32 %v2862, %v2873
      %v2886 = vmul.f32 %v2863, %v2873
      %v2887 = vmul.f32 %v2864, %v2873
      %v2888 = vmul.f32 %v2865, %v2873
      %v2889 = vmul.f32 %v2866, %v2873
      %v2890 = vmul.f32 %v2867, %v2873
      %v2891 = vld [vmem:[%s16] sm:$0x1]
      %v2893 = vlaneseq
      %v2894 = vshrl.u32 %v2893, 7
      %v2895 = vsub.s32 0, %v2894
      %v2896 = vrot.slane %v2891, %v2895
      %v2898 = vadd.f32 %v2875, %v2896
      %v2899 = vadd.f32 %v2876, %v2896
      %v2900 = vadd.f32 %v2877, %v2896
      %v2901 = vadd.f32 %v2878, %v2896
      %v2902 = vadd.f32 %v2879, %v2896
      %v2903 = vadd.f32 %v2880, %v2896
      %v2904 = vadd.f32 %v2881, %v2896
      %v2905 = vadd.f32 %v2882, %v2896
      %v2906 = vadd.f32 %v2883, %v2896
      %v2907 = vadd.f32 %v2884, %v2896
      %v2908 = vadd.f32 %v2885, %v2896
      %v2909 = vadd.f32 %v2886, %v2896
      %v2910 = vadd.f32 %v2887, %v2896
      %v2911 = vadd.f32 %v2888, %v2896
      %v2912 = vadd.f32 %v2889, %v2896
      %v2913 = vadd.f32 %v2890, %v2896
      %2914 = vst.msk [vmem:[%s622] sm:$0xff] %vm672, %v2898
      %2915 = vst.msk [vmem:[%s622 + $0x8] sm:$0xff] %vm672, %v2899
      %2916 = vst.msk [vmem:[%s622 + $0x10] sm:$0xff] %vm672, %v2900
      %2917 = vst.msk [vmem:[%s622 + $0x18] sm:$0xff] %vm672, %v2901
      %2918 = vst.msk [vmem:[%s622 + $0x20] sm:$0xff] %vm672, %v2902
      %2919 = vst.msk [vmem:[%s622 + $0x28] sm:$0xff] %vm672, %v2903
      %2920 = vst.msk [vmem:[%s622 + $0x30] sm:$0xff] %vm672, %v2904
      %2921 = vst.msk [vmem:[%s622 + $0x38] sm:$0xff] %vm672, %v2905
      %2922 = vst.msk [vmem:[%s622 + $0x40] sm:$0xff] %vm672, %v2906
      %2923 = vst.msk [vmem:[%s622 + $0x48] sm:$0xff] %vm672, %v2907
      %2924 = vst.msk [vmem:[%s622 + $0x50] sm:$0xff] %vm672, %v2908
      %2925 = vst.msk [vmem:[%s622 + $0x58] sm:$0xff] %vm672, %v2909
      %2926 = vst.msk [vmem:[%s622 + $0x60] sm:$0xff] %vm672, %v2910
      %2927 = vst.msk [vmem:[%s622 + $0x68] sm:$0xff] %vm672, %v2911
      %2928 = vst.msk [vmem:[%s622 + $0x70] sm:$0xff] %vm672, %v2912
      %2929 = vst.msk [vmem:[%s622 + $0x78] sm:$0xff] %vm672, %v2913
      %s2930 = smul.u32 16, %s28
      %p2931 = scmp.lt.s32.totalorder %s2930, 31
      %s2932 = scalar_select %p2931, %s2930, 31
      %s2933 = smul.addr %s2932, 8
      %s2934 = scalar_lea.vmem %s17, %s2933
      // Predicated region
      $region89: #{shallow_lattice_encoder_layer.1} parent=87 // pred_check
        %p2935 = pneg %p423
      $region90: #{shallow_lattice_encoder_layer.1} parent=87 // pred_check_branch
        %2937 = sbr.rel (%p2935) target = $region92
      $region91: #{shallow_lattice_encoder_layer.1} parent=87 // pred_region
        %s2938 = smul.u32 16, %s28
      $region92: #{shallow_lattice_encoder_layer.1} parent=87 // pred_fallthru
        _
    $region88: #{shallow_lattice_encoder_layer.1} parent=5 // pred_fallthru
      _
    %p2939 = scmp.le.s32.totalorder 2, %s23
    // Predicated region
    $region93: #{shallow_lattice_encoder_layer.1} parent=5 // pred_check
      %p2940 = pneg %p2939
    $region94: #{shallow_lattice_encoder_layer.1} parent=5 // pred_check_branch
      %2942 = sbr.rel (%p2940) target = $region96
    $region95: #{shallow_lattice_encoder_layer.1} parent=5 // pred_region
      %s2943 = ssub.s32 %s23, 2
      // Predicated region
      $region97: #{shallow_lattice_encoder_layer.1} parent=95 // pred_check
        %p2944 = pneg %p429
      $region98: #{shallow_lattice_encoder_layer.1} parent=95 // pred_check_branch
        %2946 = sbr.rel (%p2944) target = $region100
      $region99: #{shallow_lattice_encoder_layer.1} parent=95 // pred_region
        %s2947 = smul.u32 16, %s29
        %p2948 = scmp.lt.s32.totalorder %s2947, 31
        %s2949 = scalar_select %p2948, %s2947, 31
        %s2950 = smul.addr %s2949, 8
        %s2951 = scalar_lea.vmem %s17, %s2950
      $region100: #{shallow_lattice_encoder_layer.1} parent=95 // pred_fallthru
        _
    $region96: #{shallow_lattice_encoder_layer.1} parent=5 // pred_fallthru
      _
  $region6: #{shallow_lattice_encoder_layer.1} parent=0 // loop_footer
    %s27 = sadd.s32 1, %s23
  $region7: #{shallow_lattice_encoder_layer.1} parent=0 // loop_footer_branch
    %22 = sbr.rel target = $region3
  $region8: #{shallow_lattice_encoder_layer.1} parent=0 // loop_exit
    _

</llo_original>
